<compile_context>
chip_gen: v7x
topology: tpu7x:2x2x1
jax: 0.10.0
libtpu: 0.0.40
codegen_flags: <defaults>
</compile_context>

<pallas_src>
import functools

import jax
import jax.numpy as jnp
from jax import lax
from jax.experimental import pallas as pl
from jax.experimental.pallas import tpu as pltpu


def conv_pool_stats_kernel(x_ref, w_ref, yp_ref, stats_ref,
                           xp_scr, patch_scr, y_scr):
    """Per image: 3x3 conv as one MXU matmul (taps folded into K), BN sum/sumsq
    accumulation across the batch grid axis, 2x2 max-pool of the raw conv output.

    x_ref     : (1, H, W, Cin)        one NHWC image                   [VMEM]
    w_ref     : (9*Cin, Cp)           folded conv weight, lane-padded  [VMEM]
    yp_ref    : (1, H//2, W//2, Cp)   pooled raw conv output           [VMEM]
    stats_ref : (2, Cp)               [sum ; sum-of-squares] resident  [VMEM]
    xp_scr    : (H+2, W+2, Cin)       zero-padded image (halo)         scratch
    patch_scr : (H*W, 9*Cin)          im2col patches                   scratch
    y_scr     : (H, W, Cp)            raw conv output (for pooling)    scratch
    """
    b = pl.program_id(0)
    _, H, W, Cin = x_ref.shape
    Hp, Wp = H // 2, W // 2
    Cp = w_ref.shape[1]

    @pl.when(b == 0)
    def _init():
        xp_scr[...] = jnp.zeros_like(xp_scr)        # halo zeros, written once
        stats_ref[...] = jnp.zeros_like(stats_ref)  # BN accumulators

    # Halo handled in-kernel: only the interior is (re)written each grid step,
    # so there is no wrapper-side full-input pad / HBM rewrite.
    xp_scr[1:H + 1, 1:W + 1, :] = x_ref[0]

    # im2col: fold the 9 taps into the contraction dimension.
    # patch[h*W + w, (dy*3 + dx)*Cin + c] = x_pad[h + dy, w + dx, c]
    for dy in range(3):
        for dx in range(3):
            t = dy * 3 + dx
            patch_scr[:, t * Cin:(t + 1) * Cin] = (
                xp_scr[dy:dy + H, dx:dx + W, :].reshape(H * W, Cin))

    # One MXU matmul per image, K = 9*Cin (vs 9 matmuls with K = Cin).
    # TODO(synk): on v6e/v7x, feed bf16 operands here (keep f32 accumulate).
    y2d = jnp.dot(patch_scr[...], w_ref[...],
                  preferred_element_type=jnp.float32)            # (H*W, Cp)

    # BatchNorm batch statistics, accumulated over the ("arbitrary") batch axis
    # in a single sweep (sum and sum-of-squares).
    stats_ref[0:1, :] = stats_ref[0:1, :] + jnp.sum(y2d, axis=0, keepdims=True)
    stats_ref[1:2, :] = stats_ref[1:2, :] + jnp.sum(y2d * y2d, axis=0,
                                                    keepdims=True)

    # 2x2 max-pool of the *raw* conv output.  The BN scale is positive and ReLU
    # is monotone, so pooling first is exact and cuts downstream work/HBM 4x.
    y_scr[...] = y2d.reshape(H, W, Cp)
    wpool = jnp.maximum(y_scr[:, pl.ds(0, Wp, stride=2), :],
                        y_scr[:, pl.ds(1, Wp, stride=2), :])     # (H, Wp, Cp)
    wpool = wpool.reshape(Hp, 2, Wp, Cp)                         # row pairs
    yp_ref[0] = jnp.maximum(wpool[:, 0, :, :], wpool[:, 1, :, :])


def bn_relu_kernel(yp_ref, stats_ref, o_ref, *, count, eps):
    """BatchNorm (batch stats, gamma=1, beta=0) + ReLU on the pooled conv
    output.  Pure elementwise, lane-dense, grid axis 'parallel'."""
    inv_n = 1.0 / count
    mean = stats_ref[0:1, :] * inv_n                   # (1, Cp)
    var = stats_ref[1:2, :] * inv_n - mean * mean      # biased variance
    scale = lax.rsqrt(var + eps)                       # gamma = 1
    shift = -mean * scale                              # beta  = 0
    o_ref[...] = jnp.maximum(yp_ref[...] * scale + shift, 0.0)


def conv_block_forward(x_nchw, w_oihw, bias=None, eps=1e-5):
    """ConvBlock.forward (default config).  NCHW / OIHW in, NCHW out."""
    B, Cin, H, W = x_nchw.shape
    Cout = w_oihw.shape[0]
    assert w_oihw.shape == (Cout, Cin, 3, 3)
    assert H % 2 == 0 and W % 2 == 0
    Hp, Wp = H // 2, W // 2
    Cp = ((Cout + 127) // 128) * 128   # lane-pad channels -> unmasked vst, dense vregs
    # Conv bias is exactly cancelled by the batch-stat BN mean subtraction
    # (and maml_init_ zeroes it) -> dead work, dropped.
    del bias

    # Layout plumbing only.
    x_nhwc = jnp.transpose(x_nchw, (0, 2, 3, 1)).astype(jnp.float32)
    w9 = jnp.transpose(w_oihw, (2, 3, 1, 0)).reshape(9 * Cin, Cout)   # (dy,dx,ci)->rows
    w9 = jnp.pad(w9.astype(jnp.float32), ((0, 0), (0, Cp - Cout)))

    # Pass 1: conv + BN statistics + 2x2 max-pool of the raw conv output.
    yp, stats = pl.pallas_call(
        conv_pool_stats_kernel,
        out_shape=(jax.ShapeDtypeStruct((B, Hp, Wp, Cp), jnp.float32),
                   jax.ShapeDtypeStruct((2, Cp), jnp.float32)),
        grid=(B,),
        in_specs=[
            pl.BlockSpec((1, H, W, Cin), lambda b: (b, 0, 0, 0)),
            pl.BlockSpec((9 * Cin, Cp), lambda b: (0, 0)),
        ],
        out_specs=(
            pl.BlockSpec((1, Hp, Wp, Cp), lambda b: (b, 0, 0, 0)),
            pl.BlockSpec((2, Cp), lambda b: (0, 0)),   # resident accumulator
        ),
        scratch_shapes=[
            pltpu.VMEM((H + 2, W + 2, Cin), jnp.float32),
            pltpu.VMEM((H * W, 9 * Cin), jnp.float32),
            pltpu.VMEM((H, W, Cp), jnp.float32),
        ],
        compiler_params=pltpu.CompilerParams(
            dimension_semantics=("arbitrary",)),   # stats accumulate across batch
    )(x_nhwc, w9)

    # Pass 2: normalize + ReLU on the (4x smaller) pooled tensor.
    out_p = pl.pallas_call(
        functools.partial(bn_relu_kernel, count=float(B * H * W), eps=eps),
        out_shape=jax.ShapeDtypeStruct((B, Hp, Wp, Cp), jnp.float32),
        grid=(B,),
        in_specs=[
            pl.BlockSpec((1, Hp, Wp, Cp), lambda b: (b, 0, 0, 0)),
            pl.BlockSpec((2, Cp), lambda b: (0, 0)),
        ],
        out_specs=pl.BlockSpec((1, Hp, Wp, Cp), lambda b: (b, 0, 0, 0)),
        compiler_params=pltpu.CompilerParams(
            dimension_semantics=("parallel",)),    # megacore-friendly on v7x
    )(yp, stats)

    # Un-plumb: drop the lane padding, back to NCHW.
    return jnp.transpose(out_p[:, :, :, :Cout], (0, 3, 1, 2))


def ref_forward(x, w, b):
    """Pure-JAX reference matching the PyTorch ConvBlock forward."""
    y = lax.conv_general_dilated(
        x, w, window_strides=(1, 1), padding=((1, 1), (1, 1)),
        dimension_numbers=("NCHW", "OIHW", "NCHW"))
    y = y + b[None, :, None, None]
    mean = y.mean(axis=(0, 2, 3), keepdims=True)
    var = ((y - mean) ** 2).mean(axis=(0, 2, 3), keepdims=True)
    y = (y - mean) / jnp.sqrt(var + 1e-5)
    y = jnp.maximum(y, 0.0)
    B, C, H, W = y.shape
    return y.reshape(B, C, H // 2, 2, W // 2, 2).max(axis=(3, 5))


if __name__ == "__main__":
    B, Cin, Cout, H, W = 2, 4, 8, 16, 16

    key = jax.random.PRNGKey(0)
    kx, kw = jax.random.split(key)
    x = jax.random.normal(kx, (B, Cin, H, W), dtype=jnp.float32)

    # maml_init_: xavier_uniform(gain=1) weight, zero bias
    fan_in, fan_out = Cin * 9, Cout * 9
    bound = (6.0 / (fan_in + fan_out)) ** 0.5
    w = jax.random.uniform(kw, (Cout, Cin, 3, 3), dtype=jnp.float32,
                           minval=-bound, maxval=bound)
    b = jnp.zeros((Cout,), jnp.float32)

    out = conv_block_forward(x, w, b)
    out = jax.block_until_ready(out)
    assert out.shape == (B, Cout, H // 2, W // 2), out.shape

    ref = ref_forward(x, w, b)
    if bool(jnp.allclose(out, ref, atol=2e-4, rtol=2e-4)):
        print("KERNEL_OK")
    else:
        err = float(jnp.max(jnp.abs(out - ref)))
        raise SystemExit(f"mismatch vs reference, max abs err = {err}")
</pallas_src>

<mosaic_0001>
module attributes {stable_mosaic.version = 11 : i64} {
  func.func @conv_pool_stats_kernel(%arg0: i32, %arg1: memref<1x16x16x4xf32, #tpu.memory_space<vmem>>, %arg2: memref<36x128xf32, #tpu.memory_space<vmem>>, %arg3: memref<1x8x8x128xf32, #tpu.memory_space<vmem>>, %arg4: memref<2x128xf32, #tpu.memory_space<vmem>>, %arg5: memref<18x18x4xf32, #tpu.memory_space<vmem>>, %arg6: memref<256x36xf32, #tpu.memory_space<vmem>>, %arg7: memref<16x16x128xf32, #tpu.memory_space<vmem>>) attributes {dimension_semantics = [#tpu.dimension_semantics<arbitrary>], iteration_bounds = array<i64: 2>, scalar_prefetch = 0 : i64, scratch_operands = 3 : i64, tpu.core_type = #tpu.core_type<tc>, window_params = [{transform_indices = @transform_0, window_bounds = array<i64: 1, 16, 16, 4>}, {pipeline_mode = #tpu.pipeline_mode<synchronous>, transform_indices = @transform_1, window_bounds = array<i64: 36, 128>}, {transform_indices = @transform_2, window_bounds = array<i64: 1, 8, 8, 128>}, {pipeline_mode = #tpu.pipeline_mode<synchronous>, transform_indices = @transform_3, window_bounds = array<i64: 2, 128>}]} {
    %c0_i32 = arith.constant 0 : i32
    %0 = arith.cmpi eq, %arg0, %c0_i32 : i32
    %1 = arith.extui %0 : i1 to i32
    %c0_i32_0 = arith.constant 0 : i32
    %2 = arith.cmpi ne, %1, %c0_i32_0 : i32
    scf.if %2 {
      %cst_69 = arith.constant 0.000000e+00 : f32
      %61 = vector.broadcast %cst_69 : f32 to vector<18x18x4xf32>
      %c0_70 = arith.constant 0 : index
      %c0_71 = arith.constant 0 : index
      %c0_72 = arith.constant 0 : index
      %62 = vector.load %arg5[%c0_70, %c0_71, %c0_72] : memref<18x18x4xf32, #tpu.memory_space<vmem>>, vector<18x18x4xf32>
      tpu.vector_store %arg5[%c0_70, %c0_71, %c0_72], %61 {strides = array<i32>} : memref<18x18x4xf32, #tpu.memory_space<vmem>>, vector<18x18x4xf32>,
      %cst_73 = arith.constant 0.000000e+00 : f32
      %63 = vector.broadcast %cst_73 : f32 to vector<2x128xf32>
      %c0_74 = arith.constant 0 : index
      %c0_75 = arith.constant 0 : index
      %64 = vector.load %arg4[%c0_74, %c0_75] : memref<2x128xf32, #tpu.memory_space<vmem>>, vector<2x128xf32>
      tpu.vector_store %arg4[%c0_74, %c0_75], %63 {strides = array<i32>} : memref<2x128xf32, #tpu.memory_space<vmem>>, vector<2x128xf32>,
    } else {
    }
    %c0 = arith.constant 0 : index
    %c0_1 = arith.constant 0 : index
    %c0_2 = arith.constant 0 : index
    %c0_3 = arith.constant 0 : index
    %3 = vector.load %arg1[%c0, %c0_1, %c0_2, %c0_3] : memref<1x16x16x4xf32, #tpu.memory_space<vmem>>, vector<1x16x16x4xf32>
    %4 = vector.shape_cast %3 : vector<1x16x16x4xf32> to vector<16x16x4xf32>
    %c1 = arith.constant 1 : index
    %c1_4 = arith.constant 1 : index
    %c0_5 = arith.constant 0 : index
    %5 = vector.load %arg5[%c1, %c1_4, %c0_5] : memref<18x18x4xf32, #tpu.memory_space<vmem>>, vector<16x16x4xf32>
    tpu.vector_store %arg5[%c1, %c1_4, %c0_5], %4 {strides = array<i32>} : memref<18x18x4xf32, #tpu.memory_space<vmem>>, vector<16x16x4xf32>,
    %c0_6 = arith.constant 0 : index
    %c0_7 = arith.constant 0 : index
    %c0_8 = arith.constant 0 : index
    %6 = vector.load %arg5[%c0_6, %c0_7, %c0_8] : memref<18x18x4xf32, #tpu.memory_space<vmem>>, vector<16x16x4xf32>
    %7 = vector.shape_cast %6 : vector<16x16x4xf32> to vector<256x4xf32>
    %c0_9 = arith.constant 0 : index
    %c0_10 = arith.constant 0 : index
    %8 = vector.load %arg6[%c0_9, %c0_10] : memref<256x36xf32, #tpu.memory_space<vmem>>, vector<256x4xf32>
    tpu.vector_store %arg6[%c0_9, %c0_10], %7 {strides = array<i32>} : memref<256x36xf32, #tpu.memory_space<vmem>>, vector<256x4xf32>,
    %c0_11 = arith.constant 0 : index
    %c1_12 = arith.constant 1 : index
    %c0_13 = arith.constant 0 : index
    %9 = vector.load %arg5[%c0_11, %c1_12, %c0_13] : memref<18x18x4xf32, #tpu.memory_space<vmem>>, vector<16x16x4xf32>
    %10 = vector.shape_cast %9 : vector<16x16x4xf32> to vector<256x4xf32>
    %c0_14 = arith.constant 0 : index
    %c4 = arith.constant 4 : index
    %11 = vector.load %arg6[%c0_14, %c4] : memref<256x36xf32, #tpu.memory_space<vmem>>, vector<256x4xf32>
    tpu.vector_store %arg6[%c0_14, %c4], %10 {strides = array<i32>} : memref<256x36xf32, #tpu.memory_space<vmem>>, vector<256x4xf32>,
    %c0_15 = arith.constant 0 : index
    %c2 = arith.constant 2 : index
    %c0_16 = arith.constant 0 : index
    %12 = vector.load %arg5[%c0_15, %c2, %c0_16] : memref<18x18x4xf32, #tpu.memory_space<vmem>>, vector<16x16x4xf32>
    %13 = vector.shape_cast %12 : vector<16x16x4xf32> to vector<256x4xf32>
    %c0_17 = arith.constant 0 : index
    %c8 = arith.constant 8 : index
    %14 = vector.load %arg6[%c0_17, %c8] : memref<256x36xf32, #tpu.memory_space<vmem>>, vector<256x4xf32>
    tpu.vector_store %arg6[%c0_17, %c8], %13 {strides = array<i32>} : memref<256x36xf32, #tpu.memory_space<vmem>>, vector<256x4xf32>,
    %c1_18 = arith.constant 1 : index
    %c0_19 = arith.constant 0 : index
    %c0_20 = arith.constant 0 : index
    %15 = vector.load %arg5[%c1_18, %c0_19, %c0_20] : memref<18x18x4xf32, #tpu.memory_space<vmem>>, vector<16x16x4xf32>
    %16 = vector.shape_cast %15 : vector<16x16x4xf32> to vector<256x4xf32>
    %c0_21 = arith.constant 0 : index
    %c12 = arith.constant 12 : index
    %17 = vector.load %arg6[%c0_21, %c12] : memref<256x36xf32, #tpu.memory_space<vmem>>, vector<256x4xf32>
    tpu.vector_store %arg6[%c0_21, %c12], %16 {strides = array<i32>} : memref<256x36xf32, #tpu.memory_space<vmem>>, vector<256x4xf32>,
    %c1_22 = arith.constant 1 : index
    %c1_23 = arith.constant 1 : index
    %c0_24 = arith.constant 0 : index
    %18 = vector.load %arg5[%c1_22, %c1_23, %c0_24] : memref<18x18x4xf32, #tpu.memory_space<vmem>>, vector<16x16x4xf32>
    %19 = vector.shape_cast %18 : vector<16x16x4xf32> to vector<256x4xf32>
    %c0_25 = arith.constant 0 : index
    %c16 = arith.constant 16 : index
    %20 = vector.load %arg6[%c0_25, %c16] : memref<256x36xf32, #tpu.memory_space<vmem>>, vector<256x4xf32>
    tpu.vector_store %arg6[%c0_25, %c16], %19 {strides = array<i32>} : memref<256x36xf32, #tpu.memory_space<vmem>>, vector<256x4xf32>,
    %c1_26 = arith.constant 1 : index
    %c2_27 = arith.constant 2 : index
    %c0_28 = arith.constant 0 : index
    %21 = vector.load %arg5[%c1_26, %c2_27, %c0_28] : memref<18x18x4xf32, #tpu.memory_space<vmem>>, vector<16x16x4xf32>
    %22 = vector.shape_cast %21 : vector<16x16x4xf32> to vector<256x4xf32>
    %c0_29 = arith.constant 0 : index
    %c20 = arith.constant 20 : index
    %23 = vector.load %arg6[%c0_29, %c20] : memref<256x36xf32, #tpu.memory_space<vmem>>, vector<256x4xf32>
    tpu.vector_store %arg6[%c0_29, %c20], %22 {strides = array<i32>} : memref<256x36xf32, #tpu.memory_space<vmem>>, vector<256x4xf32>,
    %c2_30 = arith.constant 2 : index
    %c0_31 = arith.constant 0 : index
    %c0_32 = arith.constant 0 : index
    %24 = vector.load %arg5[%c2_30, %c0_31, %c0_32] : memref<18x18x4xf32, #tpu.memory_space<vmem>>, vector<16x16x4xf32>
    %25 = vector.shape_cast %24 : vector<16x16x4xf32> to vector<256x4xf32>
    %c0_33 = arith.constant 0 : index
    %c24 = arith.constant 24 : index
    %26 = vector.load %arg6[%c0_33, %c24] : memref<256x36xf32, #tpu.memory_space<vmem>>, vector<256x4xf32>
    tpu.vector_store %arg6[%c0_33, %c24], %25 {strides = array<i32>} : memref<256x36xf32, #tpu.memory_space<vmem>>, vector<256x4xf32>,
    %c2_34 = arith.constant 2 : index
    %c1_35 = arith.constant 1 : index
    %c0_36 = arith.constant 0 : index
    %27 = vector.load %arg5[%c2_34, %c1_35, %c0_36] : memref<18x18x4xf32, #tpu.memory_space<vmem>>, vector<16x16x4xf32>
    %28 = vector.shape_cast %27 : vector<16x16x4xf32> to vector<256x4xf32>
    %c0_37 = arith.constant 0 : index
    %c28 = arith.constant 28 : index
    %29 = vector.load %arg6[%c0_37, %c28] : memref<256x36xf32, #tpu.memory_space<vmem>>, vector<256x4xf32>
    tpu.vector_store %arg6[%c0_37, %c28], %28 {strides = array<i32>} : memref<256x36xf32, #tpu.memory_space<vmem>>, vector<256x4xf32>,
    %c2_38 = arith.constant 2 : index
    %c2_39 = arith.constant 2 : index
    %c0_40 = arith.constant 0 : index
    %30 = vector.load %arg5[%c2_38, %c2_39, %c0_40] : memref<18x18x4xf32, #tpu.memory_space<vmem>>, vector<16x16x4xf32>
    %31 = vector.shape_cast %30 : vector<16x16x4xf32> to vector<256x4xf32>
    %c0_41 = arith.constant 0 : index
    %c32 = arith.constant 32 : index
    %32 = vector.load %arg6[%c0_41, %c32] : memref<256x36xf32, #tpu.memory_space<vmem>>, vector<256x4xf32>
    tpu.vector_store %arg6[%c0_41, %c32], %31 {strides = array<i32>} : memref<256x36xf32, #tpu.memory_space<vmem>>, vector<256x4xf32>,
    %c0_42 = arith.constant 0 : index
    %c0_43 = arith.constant 0 : index
    %33 = vector.load %arg6[%c0_42, %c0_43] : memref<256x36xf32, #tpu.memory_space<vmem>>, vector<256x36xf32>
    %c0_44 = arith.constant 0 : index
    %c0_45 = arith.constant 0 : index
    %34 = vector.load %arg2[%c0_44, %c0_45] : memref<36x128xf32, #tpu.memory_space<vmem>>, vector<36x128xf32>
    %cst = arith.constant dense<0.000000e+00> : vector<256x128xf32>
    %35 = tpu.matmul %33, %34, %cst {dimension_numbers = #tpu.dot_dimension_numbers<[1], [0], [0], [1], [0, 0, 1, 1], [], []>} : vector<256x36xf32>, vector<36x128xf32>, vector<256x128xf32> -> vector<256x128xf32>
    %c0_46 = arith.constant 0 : index
    %c0_47 = arith.constant 0 : index
    %36 = vector.load %arg4[%c0_46, %c0_47] : memref<2x128xf32, #tpu.memory_space<vmem>>, vector<1x128xf32>
    %cst_48 = arith.constant dense<0.000000e+00> : vector<128xf32>
    %37 = vector.multi_reduction <add>, %35, %cst_48 [0] : vector<256x128xf32> to vector<128xf32>
    %38 = vector.shape_cast %37 : vector<128xf32> to vector<1x128xf32>
    %39 = arith.addf %36, %38 : vector<1x128xf32>
    %c0_49 = arith.constant 0 : index
    %c0_50 = arith.constant 0 : index
    %40 = vector.load %arg4[%c0_49, %c0_50] : memref<2x128xf32, #tpu.memory_space<vmem>>, vector<1x128xf32>
    tpu.vector_store %arg4[%c0_49, %c0_50], %39 {strides = array<i32>} : memref<2x128xf32, #tpu.memory_space<vmem>>, vector<1x128xf32>,
    %c1_51 = arith.constant 1 : index
    %c0_52 = arith.constant 0 : index
    %41 = vector.load %arg4[%c1_51, %c0_52] : memref<2x128xf32, #tpu.memory_space<vmem>>, vector<1x128xf32>
    %42 = arith.mulf %35, %35 : vector<256x128xf32>
    %cst_53 = arith.constant dense<0.000000e+00> : vector<128xf32>
    %43 = vector.multi_reduction <add>, %42, %cst_53 [0] : vector<256x128xf32> to vector<128xf32>
    %44 = vector.shape_cast %43 : vector<128xf32> to vector<1x128xf32>
    %45 = arith.addf %41, %44 : vector<1x128xf32>
    %c1_54 = arith.constant 1 : index
    %c0_55 = arith.constant 0 : index
    %46 = vector.load %arg4[%c1_54, %c0_55] : memref<2x128xf32, #tpu.memory_space<vmem>>, vector<1x128xf32>
    tpu.vector_store %arg4[%c1_54, %c0_55], %45 {strides = array<i32>} : memref<2x128xf32, #tpu.memory_space<vmem>>, vector<1x128xf32>,
    %47 = vector.shape_cast %35 : vector<256x128xf32> to vector<16x16x128xf32>
    %c0_56 = arith.constant 0 : index
    %c0_57 = arith.constant 0 : index
    %c0_58 = arith.constant 0 : index
    %48 = vector.load %arg7[%c0_56, %c0_57, %c0_58] : memref<16x16x128xf32, #tpu.memory_space<vmem>>, vector<16x16x128xf32>
    tpu.vector_store %arg7[%c0_56, %c0_57, %c0_58], %47 {strides = array<i32>} : memref<16x16x128xf32, #tpu.memory_space<vmem>>, vector<16x16x128xf32>,
    %c0_59 = arith.constant 0 : index
    %c0_60 = arith.constant 0 : index
    %c0_61 = arith.constant 0 : index
    %49 = tpu.strided_load %arg7[%c0_59, %c0_60, %c0_61] {strides = array<i32: 1, 2, 1>} : memref<16x16x128xf32, #tpu.memory_space<vmem>>, vector<16x8x128xf32>
    %c0_62 = arith.constant 0 : index
    %c1_63 = arith.constant 1 : index
    %c0_64 = arith.constant 0 : index
    %50 = tpu.strided_load %arg7[%c0_62, %c1_63, %c0_64] {strides = array<i32: 1, 2, 1>} : memref<16x16x128xf32, #tpu.memory_space<vmem>>, vector<16x8x128xf32>
    %51 = arith.maximumf %49, %50 : vector<16x8x128xf32>
    %52 = vector.shape_cast %51 : vector<16x8x128xf32> to vector<8x2x8x128xf32>
    %53 = vector.extract_strided_slice %52 {offsets = [0, 0, 0, 0], sizes = [8, 1, 8, 128], strides = [1, 1, 1, 1]} : vector<8x2x8x128xf32> to vector<8x1x8x128xf32>
    %54 = vector.shape_cast %53 : vector<8x1x8x128xf32> to vector<8x8x128xf32>
    %55 = vector.extract_strided_slice %52 {offsets = [0, 1, 0, 0], sizes = [8, 1, 8, 128], strides = [1, 1, 1, 1]} : vector<8x2x8x128xf32> to vector<8x1x8x128xf32>
    %56 = vector.shape_cast %55 : vector<8x1x8x128xf32> to vector<8x8x128xf32>
    %57 = arith.maximumf %54, %56 : vector<8x8x128xf32>
    %c0_65 = arith.constant 0 : index
    %c0_66 = arith.constant 0 : index
    %c0_67 = arith.constant 0 : index
    %c0_68 = arith.constant 0 : index
    %58 = vector.load %arg3[%c0_65, %c0_66, %c0_67, %c0_68] : memref<1x8x8x128xf32, #tpu.memory_space<vmem>>, vector<1x8x8x128xf32>
    %59 = vector.shape_cast %58 : vector<1x8x8x128xf32> to vector<8x8x128xf32>
    %60 = vector.shape_cast %57 : vector<8x8x128xf32> to vector<1x8x8x128xf32>
    tpu.vector_store %arg3[%c0_65, %c0_66, %c0_67, %c0_68], %60 {strides = array<i32>} : memref<1x8x8x128xf32, #tpu.memory_space<vmem>>, vector<1x8x8x128xf32>,
    return
  }
  func.func @transform_0(%arg0: i32) -> (i32, i32, i32, i32) {
    %c0_i32 = arith.constant 0 : i32
    %c0_i32_0 = arith.constant 0 : i32
    %c0_i32_1 = arith.constant 0 : i32
    %c0_i32_2 = arith.constant 0 : i32
    return %arg0, %c0_i32, %c0_i32_0, %c0_i32_1 : i32, i32, i32, i32
  }
  func.func @transform_1(%arg0: i32) -> (i32, i32) {
    %c0_i32 = arith.constant 0 : i32
    %c0_i32_0 = arith.constant 0 : i32
    %c0_i32_1 = arith.constant 0 : i32
    return %c0_i32, %c0_i32_0 : i32, i32
  }
  func.func @transform_2(%arg0: i32) -> (i32, i32, i32, i32) {
    %c0_i32 = arith.constant 0 : i32
    %c0_i32_0 = arith.constant 0 : i32
    %c0_i32_1 = arith.constant 0 : i32
    %c0_i32_2 = arith.constant 0 : i32
    return %arg0, %c0_i32, %c0_i32_0, %c0_i32_1 : i32, i32, i32, i32
  }
  func.func @transform_3(%arg0: i32) -> (i32, i32) {
    %c0_i32 = arith.constant 0 : i32
    %c0_i32_0 = arith.constant 0 : i32
    %c0_i32_1 = arith.constant 0 : i32
    return %c0_i32, %c0_i32_0 : i32, i32
  }
}

</mosaic_0001>

<llo_original>
// kernel: tpu_custom_call.1
$region0: #{tpu_custom_call.1}
  #allocation0 [shape = 'u32[]', space=smem, size = 0x4, offset = 0x4, fixed_abs, tag = 'smem constant byte address 0x4 - core index']
  #allocation1 [shape = 'u32[144,128]{1,0:T(1,128)}', space=vmem, size = 0x12000, scoped, tag = 'internal scratch']
  #allocation2 [shape = 'f32[18,18,4]{2,1,0:T(8,128)}', space=vmem, size = 0x36000, scoped, tag = 'scratch operand']
  #allocation3 [shape = 'f32[256,36]{1,0:T(8,128)}', space=vmem, size = 0x20000, scoped, tag = 'scratch operand']
  #allocation4 [shape = 'f32[16,16,128]{2,1,0:T(8,128)}', space=vmem, size = 0x20000, scoped, tag = 'scratch operand']
  %s0 = inlined_call_operand.vmem [shape: f32[2,16,16,4], index: 0, kind: input, shape index: {}]
  %s1 = inlined_call_operand.vmem [shape: f32[36,128], index: 1, kind: input, shape index: {}]
  %s2 = inlined_call_operand.hbm [shape: f32[2,8,8,128], index: 2, kind: output, shape index: {0}]
  %s3 = inlined_call_operand.hbm [shape: f32[2,128], index: 3, kind: output, shape index: {1}]
  %4 = xla_tuple %s2, %s3
  %s5 = sld [smem:[#allocation0]]
  $region53: #{tpu_custom_call.1} parent=0
    _
  %s7 = ssub.s32 1, %s5
  %s8 = scalar_select 0, %s7, %s5
  $region1: #{tpu_custom_call.1} parent=0
    #allocation5 [shape = 'u8[65536]{0}', space=vmem, size = 0x10000, scoped, tag = 'output window, operand 0']
    #allocation6 [shape = 's32[2]{0}', space=sflag, size = 0x8, scoped, tag = 'scoped memory for tpu_custom_call.1']
    #allocation7 [shape = 'u8[1024]{0}', space=vmem, size = 0x400, scoped, tag = 'output window, operand 1, single buffered']
    #allocation8 [shape = 's32[1]{0}', space=sflag, size = 0x4, scoped, tag = 'scoped memory for tpu_custom_call.1']
    %9 = vsyncpa [#allocation6], 0
    %s10 = scalar_lea.sflag [#allocation6], 1
    %11 = vsyncpa %s10, 0
    %12 = vsyncpa [#allocation8], 0
    loop: start=0, step=1, limit=4
    $region2: #{tpu_custom_call.1} parent=1 // loop_pre_header
      _
    $region3: #{tpu_custom_call.1} parent=1 // loop_header
      %s14 = sphi 0, %s18
      %p15 = scmp.ge.s32.totalorder %s14, 4
      %s24 = sphi 0, %s26
      %s27 = sphi 0, %s24
      %s28 = sphi 0, %s27
      %s44 = sphi 0, %s28
      %s48 = sphi 0, %s48
      %s50 = sphi 0, %s48
      %s51 = sphi 0, %s50
      %s65 = sphi 0, %s51
      %s71 = sphi 0, %s73
      %s74 = sphi 0, %s71
      %s75 = sphi 0, %s74
      %s91 = sphi 0, %s75
      %s95 = sphi 0, %s95
      %s97 = sphi 0, %s95
      %s98 = sphi 0, %s97
      %s112 = sphi 0, %s98
    $region4: #{tpu_custom_call.1} parent=1 // loop_header_branch
      %17 = sbr.rel (%p15) target = $region8
    $region5: #{tpu_custom_call.1} parent=1 // loop_body
      %s19 = ssub.s32 %s14, 1
      %s20 = ssub.s32 %s14, 2
      %s21 = sadd.s32 %s14, 1
      %s22 = ssub.s32 %s14, %s21
      %p23 = scmp.eq.s32.totalorder %s22, 0
      %s25 = sadd.s32 %s24, 1
      %s26 = scalar_select %p23, %s24, %s25
      %p29 = pneg %p23
      %p30 = scmp.eq.s32.totalorder %s14, 1
      %p31 = por %p29, %p30
      %p32 = scmp.ne.s32.totalorder %s24, %s27
      %p33 = scmp.eq.s32.totalorder %s14, 0
      %p34 = por %p32, %p33
      %p35 = scmp.ne.s32.totalorder %s24, %s27
      %p36 = scmp.eq.s32.totalorder %s19, 1
      %p37 = por %p35, %p36
      %p38 = scmp.ne.s32.totalorder %s27, %s28
      %p39 = scmp.eq.s32.totalorder %s19, 0
      %p40 = por %p38, %p39
      %p41 = scmp.ne.s32.totalorder %s27, %s28
      %p42 = scmp.eq.s32.totalorder %s20, 1
      %p43 = por %p41, %p42
      %p45 = scmp.ne.s32.totalorder %s28, %s44
      %p46 = scmp.eq.s32.totalorder %s20, 0
      %p47 = por %p45, %p46
      %s49 = sadd.s32 %s48, 1
      %p52 = scmp.eq.s32.totalorder %s14, 1
      %p53 = scmp.ne.s32.totalorder %s48, %s50
      %p54 = scmp.eq.s32.totalorder %s14, 0
      %p55 = por %p53, %p54
      %p56 = scmp.ne.s32.totalorder %s48, %s50
      %p57 = scmp.eq.s32.totalorder %s19, 1
      %p58 = por %p56, %p57
      %p59 = scmp.ne.s32.totalorder %s50, %s51
      %p60 = scmp.eq.s32.totalorder %s19, 0
      %p61 = por %p59, %p60
      %p62 = scmp.ne.s32.totalorder %s50, %s51
      %p63 = scmp.eq.s32.totalorder %s20, 1
      %p64 = por %p62, %p63
      %p66 = scmp.ne.s32.totalorder %s51, %s65
      %p67 = scmp.eq.s32.totalorder %s20, 0
      %p68 = por %p66, %p67
      %s69 = ssub.s32 %s14, %s21
      %p70 = scmp.eq.s32.totalorder %s69, 0
      %s72 = sadd.s32 %s71, 1
      %s73 = scalar_select %p70, %s71, %s72
      %p76 = pneg %p70
      %p77 = scmp.eq.s32.totalorder %s14, 1
      %p78 = por %p76, %p77
      %p79 = scmp.ne.s32.totalorder %s71, %s74
      %p80 = scmp.eq.s32.totalorder %s14, 0
      %p81 = por %p79, %p80
      %p82 = scmp.ne.s32.totalorder %s71, %s74
      %p83 = scmp.eq.s32.totalorder %s19, 1
      %p84 = por %p82, %p83
      %p85 = scmp.ne.s32.totalorder %s74, %s75
      %p86 = scmp.eq.s32.totalorder %s19, 0
      %p87 = por %p85, %p86
      %p88 = scmp.ne.s32.totalorder %s74, %s75
      %p89 = scmp.eq.s32.totalorder %s20, 1
      %p90 = por %p88, %p89
      %p92 = scmp.ne.s32.totalorder %s75, %s91
      %p93 = scmp.eq.s32.totalorder %s20, 0
      %p94 = por %p92, %p93
      %s96 = sadd.s32 %s95, 1
      %p99 = scmp.eq.s32.totalorder %s14, 1
      %p100 = scmp.ne.s32.totalorder %s95, %s97
      %p101 = scmp.eq.s32.totalorder %s14, 0
      %p102 = por %p100, %p101
      %p103 = scmp.ne.s32.totalorder %s95, %s97
      %p104 = scmp.eq.s32.totalorder %s19, 1
      %p105 = por %p103, %p104
      %p106 = scmp.ne.s32.totalorder %s97, %s98
      %p107 = scmp.eq.s32.totalorder %s19, 0
      %p108 = por %p106, %p107
      %p109 = scmp.ne.s32.totalorder %s97, %s98
      %p110 = scmp.eq.s32.totalorder %s20, 1
      %p111 = por %p109, %p110
      %p113 = scmp.ne.s32.totalorder %s98, %s112
      %p114 = scmp.eq.s32.totalorder %s20, 0
      %p115 = por %p113, %p114
      %p116 = scmp.le.s32.totalorder 1, %s14
      %p117 = scmp.lt.s32.totalorder %s14, 3
      %p118 = pnand %p116, %p117
      %p119 = pneg %p118
      // Predicated region
      $region9: #{tpu_custom_call.1} parent=5 // pred_check
        _
      $region10: #{tpu_custom_call.1} parent=5 // pred_check_branch
        %121 = sbr.rel (%p118) target = $region12
      $region11: #{tpu_custom_call.1} parent=5 // pred_region
        %s122 = ssub.s32 %s14, 1
        // Predicated region
        $region13: #{tpu_custom_call.1} parent=11 // pred_check
          %p123 = pneg %p61
        $region14: #{tpu_custom_call.1} parent=11 // pred_check_branch
          %125 = sbr.rel (%p123) target = $region16
        $region15: #{tpu_custom_call.1} parent=11 // pred_region
          _
        $region16: #{tpu_custom_call.1} parent=11 // pred_fallthru
          _
      $region12: #{tpu_custom_call.1} parent=5 // pred_fallthru
        _
      %p126 = scmp.lt.s32.totalorder %s14, 2
      // Predicated region
      $region17: #{tpu_custom_call.1} parent=5 // pred_check
        %p127 = pneg %p126
      $region18: #{tpu_custom_call.1} parent=5 // pred_check_branch
        %129 = sbr.rel (%p127) target = $region20
      $region19: #{tpu_custom_call.1} parent=5 // pred_region
        // Predicated region
        $region21: #{tpu_custom_call.1} parent=19 // pred_check
          %p130 = pneg %p34
        $region22: #{tpu_custom_call.1} parent=19 // pred_check_branch
          %132 = sbr.rel (%p130) target = $region24
        $region23: #{tpu_custom_call.1} parent=19 // pred_region
          %p133 = scmp.lt.s32.totalorder %s14, 1
          %s134 = scalar_select %p133, %s14, 1
          %s135 = smul.addr %s134, 32
          %s136 = smul.addr %s135, 8
          %s137 = scalar_lea.vmem %s0, %s136
        $region24: #{tpu_custom_call.1} parent=19 // pred_fallthru
          _
      $region20: #{tpu_custom_call.1} parent=5 // pred_fallthru
        _
      %p138 = scmp.le.s32.totalorder 1, %s14
      %p139 = scmp.lt.s32.totalorder %s14, 3
      %p140 = pnand %p138, %p139
      %p141 = pneg %p140
      // Predicated region
      $region25: #{tpu_custom_call.1} parent=5 // pred_check
        _
      $region26: #{tpu_custom_call.1} parent=5 // pred_check_branch
        %143 = sbr.rel (%p140) target = $region28
      $region27: #{tpu_custom_call.1} parent=5 // pred_region
        %s144 = ssub.s32 %s14, 1
        %p145 = scmp.lt.s32.totalorder %s19, 1
        %s146 = scalar_select %p145, %s19, 1
        %s147 = smul.addr %s146, 32
        %s148 = smul.addr %s147, 8
        %s149 = scalar_lea.vmem %s0, %s148
        %p150 = pneg %p40
        %p151 = pneg %p37
        %p152 = pneg %p61
        %p153 = pneg %p58
        %p154 = pneg %p87
        %p155 = pneg %p84
        %s156 = sand.u32 %s74, 1
        %s157 = scalar_lea.sflag [#allocation6], %s156
        %s158 = sand.u32 %s74, 1
        %s159 = smul.addr %s158, 64
        %s160 = scalar_lea.vmem [#allocation5], %s159
        %p161 = pneg %p108
        %p162 = pneg %p105
        %p163 = scmp.lt.s32.totalorder %s19, 1
        %s164 = scalar_select %p163, %s19, 1
        %s165 = smul.addr %s164, 32
        %s166 = smul.addr %s165, 8
        %s167 = scalar_lea.vmem %s0, %s166
        %p168 = scmp.eq.s32.totalorder %s19, 0
        // Predicated region
        $region29: #{tpu_custom_call.1} parent=27 // pred_check
          %p169 = pneg %p168
        $region30: #{tpu_custom_call.1} parent=27 // pred_check_branch
          %171 = sbr.rel (%p169) target = $region32
        $region31: #{tpu_custom_call.1} parent=27 // pred_region
          %vm172 = vcmask 31744
          %173 = vst.msk [vmem:[#allocation2] sm:$0xff] %vm172, 0.0
          %174 = vst.msk [vmem:[#allocation2 + $0x8] sm:$0xff] %vm172, 0.0
          %vm175 = vcmask 25600
          %176 = vst.msk [vmem:[#allocation2 + $0x10] sm:$0x3] %vm175, 0.0
          %177 = vst.msk [vmem:[#allocation2 + $0x18] sm:$0xff] %vm172, 0.0
          %178 = vst.msk [vmem:[#allocation2 + $0x20] sm:$0xff] %vm172, 0.0
          %179 = vst.msk [vmem:[#allocation2 + $0x28] sm:$0x3] %vm175, 0.0
          %180 = vst.msk [vmem:[#allocation2 + $0x30] sm:$0xff] %vm172, 0.0
          %181 = vst.msk [vmem:[#allocation2 + $0x38] sm:$0xff] %vm172, 0.0
          %182 = vst.msk [vmem:[#allocation2 + $0x40] sm:$0x3] %vm175, 0.0
          %183 = vst.msk [vmem:[#allocation2 + $0x48] sm:$0xff] %vm172, 0.0
          %184 = vst.msk [vmem:[#allocation2 + $0x50] sm:$0xff] %vm172, 0.0
          %185 = vst.msk [vmem:[#allocation2 + $0x58] sm:$0x3] %vm175, 0.0
          %186 = vst.msk [vmem:[#allocation2 + $0x60] sm:$0xff] %vm172, 0.0
          %187 = vst.msk [vmem:[#allocation2 + $0x68] sm:$0xff] %vm172, 0.0
          %188 = vst.msk [vmem:[#allocation2 + $0x70] sm:$0x3] %vm175, 0.0
          %189 = vst.msk [vmem:[#allocation2 + $0x78] sm:$0xff] %vm172, 0.0
          %190 = vst.msk [vmem:[#allocation2 + $0x80] sm:$0xff] %vm172, 0.0
          %191 = vst.msk [vmem:[#allocation2 + $0x88] sm:$0x3] %vm175, 0.0
          %192 = vst.msk [vmem:[#allocation2 + $0x90] sm:$0xff] %vm172, 0.0
          %193 = vst.msk [vmem:[#allocation2 + $0x98] sm:$0xff] %vm172, 0.0
          %194 = vst.msk [vmem:[#allocation2 + $0xa0] sm:$0x3] %vm175, 0.0
          %195 = vst.msk [vmem:[#allocation2 + $0xa8] sm:$0xff] %vm172, 0.0
          %196 = vst.msk [vmem:[#allocation2 + $0xb0] sm:$0xff] %vm172, 0.0
          %197 = vst.msk [vmem:[#allocation2 + $0xb8] sm:$0x3] %vm175, 0.0
          %198 = vst.msk [vmem:[#allocation2 + $0xc0] sm:$0xff] %vm172, 0.0
          %199 = vst.msk [vmem:[#allocation2 + $0xc8] sm:$0xff] %vm172, 0.0
          %200 = vst.msk [vmem:[#allocation2 + $0xd0] sm:$0x3] %vm175, 0.0
          %201 = vst.msk [vmem:[#allocation2 + $0xd8] sm:$0xff] %vm172, 0.0
          %202 = vst.msk [vmem:[#allocation2 + $0xe0] sm:$0xff] %vm172, 0.0
          %203 = vst.msk [vmem:[#allocation2 + $0xe8] sm:$0x3] %vm175, 0.0
          %204 = vst.msk [vmem:[#allocation2 + $0xf0] sm:$0xff] %vm172, 0.0
          %205 = vst.msk [vmem:[#allocation2 + $0xf8] sm:$0xff] %vm172, 0.0
          %206 = vst.msk [vmem:[#allocation2 + $0x100] sm:$0x3] %vm175, 0.0
          %207 = vst.msk [vmem:[#allocation2 + $0x108] sm:$0xff] %vm172, 0.0
          %208 = vst.msk [vmem:[#allocation2 + $0x110] sm:$0xff] %vm172, 0.0
          %209 = vst.msk [vmem:[#allocation2 + $0x118] sm:$0x3] %vm175, 0.0
          %210 = vst.msk [vmem:[#allocation2 + $0x120] sm:$0xff] %vm172, 0.0
          %211 = vst.msk [vmem:[#allocation2 + $0x128] sm:$0xff] %vm172, 0.0
          %212 = vst.msk [vmem:[#allocation2 + $0x130] sm:$0x3] %vm175, 0.0
          %213 = vst.msk [vmem:[#allocation2 + $0x138] sm:$0xff] %vm172, 0.0
          %214 = vst.msk [vmem:[#allocation2 + $0x140] sm:$0xff] %vm172, 0.0
          %215 = vst.msk [vmem:[#allocation2 + $0x148] sm:$0x3] %vm175, 0.0
          %216 = vst.msk [vmem:[#allocation2 + $0x150] sm:$0xff] %vm172, 0.0
          %217 = vst.msk [vmem:[#allocation2 + $0x158] sm:$0xff] %vm172, 0.0
          %218 = vst.msk [vmem:[#allocation2 + $0x160] sm:$0x3] %vm175, 0.0
          %219 = vst.msk [vmem:[#allocation2 + $0x168] sm:$0xff] %vm172, 0.0
          %220 = vst.msk [vmem:[#allocation2 + $0x170] sm:$0xff] %vm172, 0.0
          %221 = vst.msk [vmem:[#allocation2 + $0x178] sm:$0x3] %vm175, 0.0
          %222 = vst.msk [vmem:[#allocation2 + $0x180] sm:$0xff] %vm172, 0.0
          %223 = vst.msk [vmem:[#allocation2 + $0x188] sm:$0xff] %vm172, 0.0
          %224 = vst.msk [vmem:[#allocation2 + $0x190] sm:$0x3] %vm175, 0.0
          %225 = vst.msk [vmem:[#allocation2 + $0x198] sm:$0xff] %vm172, 0.0
          %226 = vst.msk [vmem:[#allocation2 + $0x1a0] sm:$0xff] %vm172, 0.0
          %227 = vst.msk [vmem:[#allocation2 + $0x1a8] sm:$0x3] %vm175, 0.0
          %228 = vst [vmem:[#allocation7] sm:$0x3] 0.0
        $region32: #{tpu_custom_call.1} parent=27 // pred_fallthru
          _
        %v229 = vld [vmem:[%s167] sm:$0xff]
        %v230 = vld [vmem:[%s167 + $0x8] sm:$0xff]
        %v231 = vld [vmem:[%s167 + $0x10] sm:$0xff]
        %v232 = vld [vmem:[%s167 + $0x18] sm:$0xff]
        %v233 = vld [vmem:[%s167 + $0x20] sm:$0xff]
        %v234 = vld [vmem:[%s167 + $0x28] sm:$0xff]
        %v235 = vld [vmem:[%s167 + $0x30] sm:$0xff]
        %v236 = vld [vmem:[%s167 + $0x38] sm:$0xff]
        %v237 = vld [vmem:[%s167 + $0x40] sm:$0xff]
        %v238 = vld [vmem:[%s167 + $0x48] sm:$0xff]
        %v239 = vld [vmem:[%s167 + $0x50] sm:$0xff]
        %v240 = vld [vmem:[%s167 + $0x58] sm:$0xff]
        %v241 = vld [vmem:[%s167 + $0x60] sm:$0xff]
        %v242 = vld [vmem:[%s167 + $0x68] sm:$0xff]
        %v243 = vld [vmem:[%s167 + $0x70] sm:$0xff]
        %v244 = vld [vmem:[%s167 + $0x78] sm:$0xff]
        %v245 = vld [vmem:[%s167 + $0x80] sm:$0xff]
        %v246 = vld [vmem:[%s167 + $0x88] sm:$0xff]
        %v247 = vld [vmem:[%s167 + $0x90] sm:$0xff]
        %v248 = vld [vmem:[%s167 + $0x98] sm:$0xff]
        %v249 = vld [vmem:[%s167 + $0xa0] sm:$0xff]
        %v250 = vld [vmem:[%s167 + $0xa8] sm:$0xff]
        %v251 = vld [vmem:[%s167 + $0xb0] sm:$0xff]
        %v252 = vld [vmem:[%s167 + $0xb8] sm:$0xff]
        %v253 = vld [vmem:[%s167 + $0xc0] sm:$0xff]
        %v254 = vld [vmem:[%s167 + $0xc8] sm:$0xff]
        %v255 = vld [vmem:[%s167 + $0xd0] sm:$0xff]
        %v256 = vld [vmem:[%s167 + $0xd8] sm:$0xff]
        %v257 = vld [vmem:[%s167 + $0xe0] sm:$0xff]
        %v258 = vld [vmem:[%s167 + $0xe8] sm:$0xff]
        %v259 = vld [vmem:[%s167 + $0xf0] sm:$0xff]
        %v260 = vld [vmem:[%s167 + $0xf8] sm:$0xff]
        %s261 = scalar_lea.vmem [#allocation2], 24
        %vm262 = vcmask 31744
        %263 = vst.msk [vmem:[%s261 + $0x1] sm:$0xff] %vm262, %v229
        %264 = vst.msk [vmem:[%s261 + $0x9] sm:$0xff] %vm262, %v230
        %265 = vst.msk [vmem:[%s261 + $0x19] sm:$0xff] %vm262, %v231
        %266 = vst.msk [vmem:[%s261 + $0x21] sm:$0xff] %vm262, %v232
        %267 = vst.msk [vmem:[%s261 + $0x31] sm:$0xff] %vm262, %v233
        %268 = vst.msk [vmem:[%s261 + $0x39] sm:$0xff] %vm262, %v234
        %269 = vst.msk [vmem:[%s261 + $0x49] sm:$0xff] %vm262, %v235
        %270 = vst.msk [vmem:[%s261 + $0x51] sm:$0xff] %vm262, %v236
        %271 = vst.msk [vmem:[%s261 + $0x61] sm:$0xff] %vm262, %v237
        %272 = vst.msk [vmem:[%s261 + $0x69] sm:$0xff] %vm262, %v238
        %273 = vst.msk [vmem:[%s261 + $0x79] sm:$0xff] %vm262, %v239
        %274 = vst.msk [vmem:[%s261 + $0x81] sm:$0xff] %vm262, %v240
        %275 = vst.msk [vmem:[%s261 + $0x91] sm:$0xff] %vm262, %v241
        %276 = vst.msk [vmem:[%s261 + $0x99] sm:$0xff] %vm262, %v242
        %277 = vst.msk [vmem:[%s261 + $0xa9] sm:$0xff] %vm262, %v243
        %278 = vst.msk [vmem:[%s261 + $0xb1] sm:$0xff] %vm262, %v244
        %279 = vst.msk [vmem:[%s261 + $0xc1] sm:$0xff] %vm262, %v245
        %280 = vst.msk [vmem:[%s261 + $0xc9] sm:$0xff] %vm262, %v246
        %281 = vst.msk [vmem:[%s261 + $0xd9] sm:$0xff] %vm262, %v247
        %282 = vst.msk [vmem:[%s261 + $0xe1] sm:$0xff] %vm262, %v248
        %283 = vst.msk [vmem:[%s261 + $0xf1] sm:$0xff] %vm262, %v249
        %284 = vst.msk [vmem:[%s261 + $0xf9] sm:$0xff] %vm262, %v250
        %285 = vst.msk [vmem:[%s261 + $0x109] sm:$0xff] %vm262, %v251
        %286 = vst.msk [vmem:[%s261 + $0x111] sm:$0xff] %vm262, %v252
        %287 = vst.msk [vmem:[%s261 + $0x121] sm:$0xff] %vm262, %v253
        %288 = vst.msk [vmem:[%s261 + $0x129] sm:$0xff] %vm262, %v254
        %289 = vst.msk [vmem:[%s261 + $0x139] sm:$0xff] %vm262, %v255
        %290 = vst.msk [vmem:[%s261 + $0x141] sm:$0xff] %vm262, %v256
        %291 = vst.msk [vmem:[%s261 + $0x151] sm:$0xff] %vm262, %v257
        %292 = vst.msk [vmem:[%s261 + $0x159] sm:$0xff] %vm262, %v258
        %293 = vst.msk [vmem:[%s261 + $0x169] sm:$0xff] %vm262, %v259
        %294 = vst.msk [vmem:[%s261 + $0x171] sm:$0xff] %vm262, %v260
        %v295 = vld [vmem:[#allocation2] sm:$0xff]
        %v296 = vld [vmem:[#allocation2 + $0x8] sm:$0xff]
        %v297 = vld [vmem:[#allocation2 + $0x18] sm:$0xff]
        %v298 = vld [vmem:[#allocation2 + $0x20] sm:$0xff]
        %v299 = vld [vmem:[#allocation2 + $0x30] sm:$0xff]
        %v300 = vld [vmem:[#allocation2 + $0x38] sm:$0xff]
        %v301 = vld [vmem:[#allocation2 + $0x48] sm:$0xff]
        %v302 = vld [vmem:[#allocation2 + $0x50] sm:$0xff]
        %v303 = vld [vmem:[#allocation2 + $0x60] sm:$0xff]
        %v304 = vld [vmem:[#allocation2 + $0x68] sm:$0xff]
        %v305 = vld [vmem:[#allocation2 + $0x78] sm:$0xff]
        %v306 = vld [vmem:[#allocation2 + $0x80] sm:$0xff]
        %v307 = vld [vmem:[#allocation2 + $0x90] sm:$0xff]
        %v308 = vld [vmem:[#allocation2 + $0x98] sm:$0xff]
        %v309 = vld [vmem:[#allocation2 + $0xa8] sm:$0xff]
        %v310 = vld [vmem:[#allocation2 + $0xb0] sm:$0xff]
        %v311 = vld [vmem:[#allocation2 + $0xc0] sm:$0xff]
        %v312 = vld [vmem:[#allocation2 + $0xc8] sm:$0xff]
        %v313 = vld [vmem:[#allocation2 + $0xd8] sm:$0xff]
        %v314 = vld [vmem:[#allocation2 + $0xe0] sm:$0xff]
        %v315 = vld [vmem:[#allocation2 + $0xf0] sm:$0xff]
        %v316 = vld [vmem:[#allocation2 + $0xf8] sm:$0xff]
        %v317 = vld [vmem:[#allocation2 + $0x108] sm:$0xff]
        %v318 = vld [vmem:[#allocation2 + $0x110] sm:$0xff]
        %v319 = vld [vmem:[#allocation2 + $0x120] sm:$0xff]
        %v320 = vld [vmem:[#allocation2 + $0x128] sm:$0xff]
        %v321 = vld [vmem:[#allocation2 + $0x138] sm:$0xff]
        %v322 = vld [vmem:[#allocation2 + $0x140] sm:$0xff]
        %v323 = vld [vmem:[#allocation2 + $0x150] sm:$0xff]
        %v324 = vld [vmem:[#allocation2 + $0x158] sm:$0xff]
        %v325 = vld [vmem:[#allocation2 + $0x168] sm:$0xff]
        %v326 = vld [vmem:[#allocation2 + $0x170] sm:$0xff]
        %327 = vst.msk [vmem:[#allocation3] sm:$0xff] %vm262, %v295
        %328 = vst.msk [vmem:[#allocation3 + $0x8] sm:$0xff] %vm262, %v296
        %329 = vst.msk [vmem:[#allocation3 + $0x10] sm:$0xff] %vm262, %v297
        %330 = vst.msk [vmem:[#allocation3 + $0x18] sm:$0xff] %vm262, %v298
        %331 = vst.msk [vmem:[#allocation3 + $0x20] sm:$0xff] %vm262, %v299
        %332 = vst.msk [vmem:[#allocation3 + $0x28] sm:$0xff] %vm262, %v300
        %333 = vst.msk [vmem:[#allocation3 + $0x30] sm:$0xff] %vm262, %v301
        %334 = vst.msk [vmem:[#allocation3 + $0x38] sm:$0xff] %vm262, %v302
        %335 = vst.msk [vmem:[#allocation3 + $0x40] sm:$0xff] %vm262, %v303
        %336 = vst.msk [vmem:[#allocation3 + $0x48] sm:$0xff] %vm262, %v304
        %337 = vst.msk [vmem:[#allocation3 + $0x50] sm:$0xff] %vm262, %v305
        %338 = vst.msk [vmem:[#allocation3 + $0x58] sm:$0xff] %vm262, %v306
        %339 = vst.msk [vmem:[#allocation3 + $0x60] sm:$0xff] %vm262, %v307
        %340 = vst.msk [vmem:[#allocation3 + $0x68] sm:$0xff] %vm262, %v308
        %341 = vst.msk [vmem:[#allocation3 + $0x70] sm:$0xff] %vm262, %v309
        %342 = vst.msk [vmem:[#allocation3 + $0x78] sm:$0xff] %vm262, %v310
        %343 = vst.msk [vmem:[#allocation3 + $0x80] sm:$0xff] %vm262, %v311
        %344 = vst.msk [vmem:[#allocation3 + $0x88] sm:$0xff] %vm262, %v312
        %345 = vst.msk [vmem:[#allocation3 + $0x90] sm:$0xff] %vm262, %v313
        %346 = vst.msk [vmem:[#allocation3 + $0x98] sm:$0xff] %vm262, %v314
        %347 = vst.msk [vmem:[#allocation3 + $0xa0] sm:$0xff] %vm262, %v315
        %348 = vst.msk [vmem:[#allocation3 + $0xa8] sm:$0xff] %vm262, %v316
        %349 = vst.msk [vmem:[#allocation3 + $0xb0] sm:$0xff] %vm262, %v317
        %350 = vst.msk [vmem:[#allocation3 + $0xb8] sm:$0xff] %vm262, %v318
        %351 = vst.msk [vmem:[#allocation3 + $0xc0] sm:$0xff] %vm262, %v319
        %352 = vst.msk [vmem:[#allocation3 + $0xc8] sm:$0xff] %vm262, %v320
        %353 = vst.msk [vmem:[#allocation3 + $0xd0] sm:$0xff] %vm262, %v321
        %354 = vst.msk [vmem:[#allocation3 + $0xd8] sm:$0xff] %vm262, %v322
        %355 = vst.msk [vmem:[#allocation3 + $0xe0] sm:$0xff] %vm262, %v323
        %356 = vst.msk [vmem:[#allocation3 + $0xe8] sm:$0xff] %vm262, %v324
        %357 = vst.msk [vmem:[#allocation3 + $0xf0] sm:$0xff] %vm262, %v325
        %358 = vst.msk [vmem:[#allocation3 + $0xf8] sm:$0xff] %vm262, %v326
        %v359 = vld [vmem:[#allocation2 + $0x1] sm:$0xff]
        %v360 = vld [vmem:[#allocation2 + $0x9] sm:$0xff]
        %v361 = vld [vmem:[#allocation2 + $0x19] sm:$0xff]
        %v362 = vld [vmem:[#allocation2 + $0x21] sm:$0xff]
        %v363 = vld [vmem:[#allocation2 + $0x31] sm:$0xff]
        %v364 = vld [vmem:[#allocation2 + $0x39] sm:$0xff]
        %v365 = vld [vmem:[#allocation2 + $0x49] sm:$0xff]
        %v366 = vld [vmem:[#allocation2 + $0x51] sm:$0xff]
        %v367 = vld [vmem:[#allocation2 + $0x61] sm:$0xff]
        %v368 = vld [vmem:[#allocation2 + $0x69] sm:$0xff]
        %v369 = vld [vmem:[#allocation2 + $0x79] sm:$0xff]
        %v370 = vld [vmem:[#allocation2 + $0x81] sm:$0xff]
        %v371 = vld [vmem:[#allocation2 + $0x91] sm:$0xff]
        %v372 = vld [vmem:[#allocation2 + $0x99] sm:$0xff]
        %v373 = vld [vmem:[#allocation2 + $0xa9] sm:$0xff]
        %v374 = vld [vmem:[#allocation2 + $0xb1] sm:$0xff]
        %v375 = vld [vmem:[#allocation2 + $0xc1] sm:$0xff]
        %v376 = vld [vmem:[#allocation2 + $0xc9] sm:$0xff]
        %v377 = vld [vmem:[#allocation2 + $0xd9] sm:$0xff]
        %v378 = vld [vmem:[#allocation2 + $0xe1] sm:$0xff]
        %v379 = vld [vmem:[#allocation2 + $0xf1] sm:$0xff]
        %v380 = vld [vmem:[#allocation2 + $0xf9] sm:$0xff]
        %v381 = vld [vmem:[#allocation2 + $0x109] sm:$0xff]
        %v382 = vld [vmem:[#allocation2 + $0x111] sm:$0xff]
        %v383 = vld [vmem:[#allocation2 + $0x121] sm:$0xff]
        %v384 = vld [vmem:[#allocation2 + $0x129] sm:$0xff]
        %v385 = vld [vmem:[#allocation2 + $0x139] sm:$0xff]
        %v386 = vld [vmem:[#allocation2 + $0x141] sm:$0xff]
        %v387 = vld [vmem:[#allocation2 + $0x151] sm:$0xff]
        %v388 = vld [vmem:[#allocation2 + $0x159] sm:$0xff]
        %v389 = vld [vmem:[#allocation2 + $0x169] sm:$0xff]
        %v390 = vld [vmem:[#allocation2 + $0x171] sm:$0xff]
        %423 = vrot.lane.b32.xlu0 %v359, 4
        %v424 = vpop.permute.xlu0 %423
        %425 = vrot.lane.b32.xlu0 %v360, 4
        %v426 = vpop.permute.xlu0 %425
        %427 = vrot.lane.b32.xlu0 %v361, 4
        %v428 = vpop.permute.xlu0 %427
        %429 = vrot.lane.b32.xlu0 %v362, 4
        %v430 = vpop.permute.xlu0 %429
        %431 = vrot.lane.b32.xlu0 %v363, 4
        %v432 = vpop.permute.xlu0 %431
        %433 = vrot.lane.b32.xlu0 %v364, 4
        %v434 = vpop.permute.xlu0 %433
        %435 = vrot.lane.b32.xlu0 %v365, 4
        %v436 = vpop.permute.xlu0 %435
        %437 = vrot.lane.b32.xlu0 %v366, 4
        %v438 = vpop.permute.xlu0 %437
        %439 = vrot.lane.b32.xlu0 %v367, 4
        %v440 = vpop.permute.xlu0 %439
        %441 = vrot.lane.b32.xlu0 %v368, 4
        %v442 = vpop.permute.xlu0 %441
        %443 = vrot.lane.b32.xlu0 %v369, 4
        %v444 = vpop.permute.xlu0 %443
        %445 = vrot.lane.b32.xlu0 %v370, 4
        %v446 = vpop.permute.xlu0 %445
        %447 = vrot.lane.b32.xlu0 %v371, 4
        %v448 = vpop.permute.xlu0 %447
        %449 = vrot.lane.b32.xlu0 %v372, 4
        %v450 = vpop.permute.xlu0 %449
        %451 = vrot.lane.b32.xlu0 %v373, 4
        %v452 = vpop.permute.xlu0 %451
        %453 = vrot.lane.b32.xlu0 %v374, 4
        %v454 = vpop.permute.xlu0 %453
        %455 = vrot.lane.b32.xlu0 %v375, 4
        %v456 = vpop.permute.xlu0 %455
        %457 = vrot.lane.b32.xlu0 %v376, 4
        %v458 = vpop.permute.xlu0 %457
        %459 = vrot.lane.b32.xlu0 %v377, 4
        %v460 = vpop.permute.xlu0 %459
        %461 = vrot.lane.b32.xlu0 %v378, 4
        %v462 = vpop.permute.xlu0 %461
        %463 = vrot.lane.b32.xlu0 %v379, 4
        %v464 = vpop.permute.xlu0 %463
        %465 = vrot.lane.b32.xlu0 %v380, 4
        %v466 = vpop.permute.xlu0 %465
        %467 = vrot.lane.b32.xlu0 %v381, 4
        %v468 = vpop.permute.xlu0 %467
        %469 = vrot.lane.b32.xlu0 %v382, 4
        %v470 = vpop.permute.xlu0 %469
        %471 = vrot.lane.b32.xlu0 %v383, 4
        %v472 = vpop.permute.xlu0 %471
        %473 = vrot.lane.b32.xlu0 %v384, 4
        %v474 = vpop.permute.xlu0 %473
        %475 = vrot.lane.b32.xlu0 %v385, 4
        %v476 = vpop.permute.xlu0 %475
        %477 = vrot.lane.b32.xlu0 %v386, 4
        %v478 = vpop.permute.xlu0 %477
        %479 = vrot.lane.b32.xlu0 %v387, 4
        %v480 = vpop.permute.xlu0 %479
        %481 = vrot.lane.b32.xlu0 %v388, 4
        %v482 = vpop.permute.xlu0 %481
        %483 = vrot.lane.b32.xlu0 %v389, 4
        %v484 = vpop.permute.xlu0 %483
        %485 = vrot.lane.b32.xlu0 %v390, 4
        %v486 = vpop.permute.xlu0 %485
        %vm519 = vcmask 64544
        %520 = vst.msk [vmem:[#allocation3] sm:$0xff] %vm519, %v424
        %521 = vst.msk [vmem:[#allocation3 + $0x8] sm:$0xff] %vm519, %v426
        %522 = vst.msk [vmem:[#allocation3 + $0x10] sm:$0xff] %vm519, %v428
        %523 = vst.msk [vmem:[#allocation3 + $0x18] sm:$0xff] %vm519, %v430
        %524 = vst.msk [vmem:[#allocation3 + $0x20] sm:$0xff] %vm519, %v432
        %525 = vst.msk [vmem:[#allocation3 + $0x28] sm:$0xff] %vm519, %v434
        %526 = vst.msk [vmem:[#allocation3 + $0x30] sm:$0xff] %vm519, %v436
        %527 = vst.msk [vmem:[#allocation3 + $0x38] sm:$0xff] %vm519, %v438
        %528 = vst.msk [vmem:[#allocation3 + $0x40] sm:$0xff] %vm519, %v440
        %529 = vst.msk [vmem:[#allocation3 + $0x48] sm:$0xff] %vm519, %v442
        %530 = vst.msk [vmem:[#allocation3 + $0x50] sm:$0xff] %vm519, %v444
        %531 = vst.msk [vmem:[#allocation3 + $0x58] sm:$0xff] %vm519, %v446
        %532 = vst.msk [vmem:[#allocation3 + $0x60] sm:$0xff] %vm519, %v448
        %533 = vst.msk [vmem:[#allocation3 + $0x68] sm:$0xff] %vm519, %v450
        %534 = vst.msk [vmem:[#allocation3 + $0x70] sm:$0xff] %vm519, %v452
        %535 = vst.msk [vmem:[#allocation3 + $0x78] sm:$0xff] %vm519, %v454
        %536 = vst.msk [vmem:[#allocation3 + $0x80] sm:$0xff] %vm519, %v456
        %537 = vst.msk [vmem:[#allocation3 + $0x88] sm:$0xff] %vm519, %v458
        %538 = vst.msk [vmem:[#allocation3 + $0x90] sm:$0xff] %vm519, %v460
        %539 = vst.msk [vmem:[#allocation3 + $0x98] sm:$0xff] %vm519, %v462
        %540 = vst.msk [vmem:[#allocation3 + $0xa0] sm:$0xff] %vm519, %v464
        %541 = vst.msk [vmem:[#allocation3 + $0xa8] sm:$0xff] %vm519, %v466
        %542 = vst.msk [vmem:[#allocation3 + $0xb0] sm:$0xff] %vm519, %v468
        %543 = vst.msk [vmem:[#allocation3 + $0xb8] sm:$0xff] %vm519, %v470
        %544 = vst.msk [vmem:[#allocation3 + $0xc0] sm:$0xff] %vm519, %v472
        %545 = vst.msk [vmem:[#allocation3 + $0xc8] sm:$0xff] %vm519, %v474
        %546 = vst.msk [vmem:[#allocation3 + $0xd0] sm:$0xff] %vm519, %v476
        %547 = vst.msk [vmem:[#allocation3 + $0xd8] sm:$0xff] %vm519, %v478
        %548 = vst.msk [vmem:[#allocation3 + $0xe0] sm:$0xff] %vm519, %v480
        %549 = vst.msk [vmem:[#allocation3 + $0xe8] sm:$0xff] %vm519, %v482
        %550 = vst.msk [vmem:[#allocation3 + $0xf0] sm:$0xff] %vm519, %v484
        %551 = vst.msk [vmem:[#allocation3 + $0xf8] sm:$0xff] %vm519, %v486
        %v552 = vld [vmem:[#allocation2 + $0x2] sm:$0xff]
        %v553 = vld [vmem:[#allocation2 + $0xa] sm:$0xff]
        %v554 = vld [vmem:[#allocation2 + $0x1a] sm:$0xff]
        %v555 = vld [vmem:[#allocation2 + $0x22] sm:$0xff]
        %v556 = vld [vmem:[#allocation2 + $0x32] sm:$0xff]
        %v557 = vld [vmem:[#allocation2 + $0x3a] sm:$0xff]
        %v558 = vld [vmem:[#allocation2 + $0x4a] sm:$0xff]
        %v559 = vld [vmem:[#allocation2 + $0x52] sm:$0xff]
        %v560 = vld [vmem:[#allocation2 + $0x62] sm:$0xff]
        %v561 = vld [vmem:[#allocation2 + $0x6a] sm:$0xff]
        %v562 = vld [vmem:[#allocation2 + $0x7a] sm:$0xff]
        %v563 = vld [vmem:[#allocation2 + $0x82] sm:$0xff]
        %v564 = vld [vmem:[#allocation2 + $0x92] sm:$0xff]
        %v565 = vld [vmem:[#allocation2 + $0x9a] sm:$0xff]
        %v566 = vld [vmem:[#allocation2 + $0xaa] sm:$0xff]
        %v567 = vld [vmem:[#allocation2 + $0xb2] sm:$0xff]
        %v568 = vld [vmem:[#allocation2 + $0xc2] sm:$0xff]
        %v569 = vld [vmem:[#allocation2 + $0xca] sm:$0xff]
        %v570 = vld [vmem:[#allocation2 + $0xda] sm:$0xff]
        %v571 = vld [vmem:[#allocation2 + $0xe2] sm:$0xff]
        %v572 = vld [vmem:[#allocation2 + $0xf2] sm:$0xff]
        %v573 = vld [vmem:[#allocation2 + $0xfa] sm:$0xff]
        %v574 = vld [vmem:[#allocation2 + $0x10a] sm:$0xff]
        %v575 = vld [vmem:[#allocation2 + $0x112] sm:$0xff]
        %v576 = vld [vmem:[#allocation2 + $0x122] sm:$0xff]
        %v577 = vld [vmem:[#allocation2 + $0x12a] sm:$0xff]
        %v578 = vld [vmem:[#allocation2 + $0x13a] sm:$0xff]
        %v579 = vld [vmem:[#allocation2 + $0x142] sm:$0xff]
        %v580 = vld [vmem:[#allocation2 + $0x152] sm:$0xff]
        %v581 = vld [vmem:[#allocation2 + $0x15a] sm:$0xff]
        %v582 = vld [vmem:[#allocation2 + $0x16a] sm:$0xff]
        %v583 = vld [vmem:[#allocation2 + $0x172] sm:$0xff]
        %616 = vrot.lane.b32.xlu0 %v552, 8
        %v617 = vpop.permute.xlu0 %616
        %618 = vrot.lane.b32.xlu0 %v553, 8
        %v619 = vpop.permute.xlu0 %618
        %620 = vrot.lane.b32.xlu0 %v554, 8
        %v621 = vpop.permute.xlu0 %620
        %622 = vrot.lane.b32.xlu0 %v555, 8
        %v623 = vpop.permute.xlu0 %622
        %624 = vrot.lane.b32.xlu0 %v556, 8
        %v625 = vpop.permute.xlu0 %624
        %626 = vrot.lane.b32.xlu0 %v557, 8
        %v627 = vpop.permute.xlu0 %626
        %628 = vrot.lane.b32.xlu0 %v558, 8
        %v629 = vpop.permute.xlu0 %628
        %630 = vrot.lane.b32.xlu0 %v559, 8
        %v631 = vpop.permute.xlu0 %630
        %632 = vrot.lane.b32.xlu0 %v560, 8
        %v633 = vpop.permute.xlu0 %632
        %634 = vrot.lane.b32.xlu0 %v561, 8
        %v635 = vpop.permute.xlu0 %634
        %636 = vrot.lane.b32.xlu0 %v562, 8
        %v637 = vpop.permute.xlu0 %636
        %638 = vrot.lane.b32.xlu0 %v563, 8
        %v639 = vpop.permute.xlu0 %638
        %640 = vrot.lane.b32.xlu0 %v564, 8
        %v641 = vpop.permute.xlu0 %640
        %642 = vrot.lane.b32.xlu0 %v565, 8
        %v643 = vpop.permute.xlu0 %642
        %644 = vrot.lane.b32.xlu0 %v566, 8
        %v645 = vpop.permute.xlu0 %644
        %646 = vrot.lane.b32.xlu0 %v567, 8
        %v647 = vpop.permute.xlu0 %646
        %648 = vrot.lane.b32.xlu0 %v568, 8
        %v649 = vpop.permute.xlu0 %648
        %650 = vrot.lane.b32.xlu0 %v569, 8
        %v651 = vpop.permute.xlu0 %650
        %652 = vrot.lane.b32.xlu0 %v570, 8
        %v653 = vpop.permute.xlu0 %652
        %654 = vrot.lane.b32.xlu0 %v571, 8
        %v655 = vpop.permute.xlu0 %654
        %656 = vrot.lane.b32.xlu0 %v572, 8
        %v657 = vpop.permute.xlu0 %656
        %658 = vrot.lane.b32.xlu0 %v573, 8
        %v659 = vpop.permute.xlu0 %658
        %660 = vrot.lane.b32.xlu0 %v574, 8
        %v661 = vpop.permute.xlu0 %660
        %662 = vrot.lane.b32.xlu0 %v575, 8
        %v663 = vpop.permute.xlu0 %662
        %664 = vrot.lane.b32.xlu0 %v576, 8
        %v665 = vpop.permute.xlu0 %664
        %666 = vrot.lane.b32.xlu0 %v577, 8
        %v667 = vpop.permute.xlu0 %666
        %668 = vrot.lane.b32.xlu0 %v578, 8
        %v669 = vpop.permute.xlu0 %668
        %670 = vrot.lane.b32.xlu0 %v579, 8
        %v671 = vpop.permute.xlu0 %670
        %672 = vrot.lane.b32.xlu0 %v580, 8
        %v673 = vpop.permute.xlu0 %672
        %674 = vrot.lane.b32.xlu0 %v581, 8
        %v675 = vpop.permute.xlu0 %674
        %676 = vrot.lane.b32.xlu0 %v582, 8
        %v677 = vpop.permute.xlu0 %676
        %678 = vrot.lane.b32.xlu0 %v583, 8
        %v679 = vpop.permute.xlu0 %678
        %vm712 = vcmask 97344
        %713 = vst.msk [vmem:[#allocation3] sm:$0xff] %vm712, %v617
        %714 = vst.msk [vmem:[#allocation3 + $0x8] sm:$0xff] %vm712, %v619
        %715 = vst.msk [vmem:[#allocation3 + $0x10] sm:$0xff] %vm712, %v621
        %716 = vst.msk [vmem:[#allocation3 + $0x18] sm:$0xff] %vm712, %v623
        %717 = vst.msk [vmem:[#allocation3 + $0x20] sm:$0xff] %vm712, %v625
        %718 = vst.msk [vmem:[#allocation3 + $0x28] sm:$0xff] %vm712, %v627
        %719 = vst.msk [vmem:[#allocation3 + $0x30] sm:$0xff] %vm712, %v629
        %720 = vst.msk [vmem:[#allocation3 + $0x38] sm:$0xff] %vm712, %v631
        %721 = vst.msk [vmem:[#allocation3 + $0x40] sm:$0xff] %vm712, %v633
        %722 = vst.msk [vmem:[#allocation3 + $0x48] sm:$0xff] %vm712, %v635
        %723 = vst.msk [vmem:[#allocation3 + $0x50] sm:$0xff] %vm712, %v637
        %724 = vst.msk [vmem:[#allocation3 + $0x58] sm:$0xff] %vm712, %v639
        %725 = vst.msk [vmem:[#allocation3 + $0x60] sm:$0xff] %vm712, %v641
        %726 = vst.msk [vmem:[#allocation3 + $0x68] sm:$0xff] %vm712, %v643
        %727 = vst.msk [vmem:[#allocation3 + $0x70] sm:$0xff] %vm712, %v645
        %728 = vst.msk [vmem:[#allocation3 + $0x78] sm:$0xff] %vm712, %v647
        %729 = vst.msk [vmem:[#allocation3 + $0x80] sm:$0xff] %vm712, %v649
        %730 = vst.msk [vmem:[#allocation3 + $0x88] sm:$0xff] %vm712, %v651
        %731 = vst.msk [vmem:[#allocation3 + $0x90] sm:$0xff] %vm712, %v653
        %732 = vst.msk [vmem:[#allocation3 + $0x98] sm:$0xff] %vm712, %v655
        %733 = vst.msk [vmem:[#allocation3 + $0xa0] sm:$0xff] %vm712, %v657
        %734 = vst.msk [vmem:[#allocation3 + $0xa8] sm:$0xff] %vm712, %v659
        %735 = vst.msk [vmem:[#allocation3 + $0xb0] sm:$0xff] %vm712, %v661
        %736 = vst.msk [vmem:[#allocation3 + $0xb8] sm:$0xff] %vm712, %v663
        %737 = vst.msk [vmem:[#allocation3 + $0xc0] sm:$0xff] %vm712, %v665
        %738 = vst.msk [vmem:[#allocation3 + $0xc8] sm:$0xff] %vm712, %v667
        %739 = vst.msk [vmem:[#allocation3 + $0xd0] sm:$0xff] %vm712, %v669
        %740 = vst.msk [vmem:[#allocation3 + $0xd8] sm:$0xff] %vm712, %v671
        %741 = vst.msk [vmem:[#allocation3 + $0xe0] sm:$0xff] %vm712, %v673
        %742 = vst.msk [vmem:[#allocation3 + $0xe8] sm:$0xff] %vm712, %v675
        %743 = vst.msk [vmem:[#allocation3 + $0xf0] sm:$0xff] %vm712, %v677
        %744 = vst.msk [vmem:[#allocation3 + $0xf8] sm:$0xff] %vm712, %v679
        %v745 = vld [vmem:[%s261] sm:$0xff]
        %v746 = vld [vmem:[%s261 + $0x8] sm:$0xff]
        %v747 = vld [vmem:[%s261 + $0x18] sm:$0xff]
        %v748 = vld [vmem:[%s261 + $0x20] sm:$0xff]
        %v749 = vld [vmem:[%s261 + $0x30] sm:$0xff]
        %v750 = vld [vmem:[%s261 + $0x38] sm:$0xff]
        %v751 = vld [vmem:[%s261 + $0x48] sm:$0xff]
        %v752 = vld [vmem:[%s261 + $0x50] sm:$0xff]
        %v753 = vld [vmem:[%s261 + $0x60] sm:$0xff]
        %v754 = vld [vmem:[%s261 + $0x68] sm:$0xff]
        %v755 = vld [vmem:[%s261 + $0x78] sm:$0xff]
        %v756 = vld [vmem:[%s261 + $0x80] sm:$0xff]
        %v757 = vld [vmem:[%s261 + $0x90] sm:$0xff]
        %v758 = vld [vmem:[%s261 + $0x98] sm:$0xff]
        %v759 = vld [vmem:[%s261 + $0xa8] sm:$0xff]
        %v760 = vld [vmem:[%s261 + $0xb0] sm:$0xff]
        %v761 = vld [vmem:[%s261 + $0xc0] sm:$0xff]
        %v762 = vld [vmem:[%s261 + $0xc8] sm:$0xff]
        %v763 = vld [vmem:[%s261 + $0xd8] sm:$0xff]
        %v764 = vld [vmem:[%s261 + $0xe0] sm:$0xff]
        %v765 = vld [vmem:[%s261 + $0xf0] sm:$0xff]
        %v766 = vld [vmem:[%s261 + $0xf8] sm:$0xff]
        %v767 = vld [vmem:[%s261 + $0x108] sm:$0xff]
        %v768 = vld [vmem:[%s261 + $0x110] sm:$0xff]
        %v769 = vld [vmem:[%s261 + $0x120] sm:$0xff]
        %v770 = vld [vmem:[%s261 + $0x128] sm:$0xff]
        %v771 = vld [vmem:[%s261 + $0x138] sm:$0xff]
        %v772 = vld [vmem:[%s261 + $0x140] sm:$0xff]
        %v773 = vld [vmem:[%s261 + $0x150] sm:$0xff]
        %v774 = vld [vmem:[%s261 + $0x158] sm:$0xff]
        %v775 = vld [vmem:[%s261 + $0x168] sm:$0xff]
        %v776 = vld [vmem:[%s261 + $0x170] sm:$0xff]
        %809 = vrot.lane.b32.xlu0 %v745, 12
        %v810 = vpop.permute.xlu0 %809
        %811 = vrot.lane.b32.xlu0 %v746, 12
        %v812 = vpop.permute.xlu0 %811
        %813 = vrot.lane.b32.xlu0 %v747, 12
        %v814 = vpop.permute.xlu0 %813
        %815 = vrot.lane.b32.xlu0 %v748, 12
        %v816 = vpop.permute.xlu0 %815
        %817 = vrot.lane.b32.xlu0 %v749, 12
        %v818 = vpop.permute.xlu0 %817
        %819 = vrot.lane.b32.xlu0 %v750, 12
        %v820 = vpop.permute.xlu0 %819
        %821 = vrot.lane.b32.xlu0 %v751, 12
        %v822 = vpop.permute.xlu0 %821
        %823 = vrot.lane.b32.xlu0 %v752, 12
        %v824 = vpop.permute.xlu0 %823
        %825 = vrot.lane.b32.xlu0 %v753, 12
        %v826 = vpop.permute.xlu0 %825
        %827 = vrot.lane.b32.xlu0 %v754, 12
        %v828 = vpop.permute.xlu0 %827
        %829 = vrot.lane.b32.xlu0 %v755, 12
        %v830 = vpop.permute.xlu0 %829
        %831 = vrot.lane.b32.xlu0 %v756, 12
        %v832 = vpop.permute.xlu0 %831
        %833 = vrot.lane.b32.xlu0 %v757, 12
        %v834 = vpop.permute.xlu0 %833
        %835 = vrot.lane.b32.xlu0 %v758, 12
        %v836 = vpop.permute.xlu0 %835
        %837 = vrot.lane.b32.xlu0 %v759, 12
        %v838 = vpop.permute.xlu0 %837
        %839 = vrot.lane.b32.xlu0 %v760, 12
        %v840 = vpop.permute.xlu0 %839
        %841 = vrot.lane.b32.xlu0 %v761, 12
        %v842 = vpop.permute.xlu0 %841
        %843 = vrot.lane.b32.xlu0 %v762, 12
        %v844 = vpop.permute.xlu0 %843
        %845 = vrot.lane.b32.xlu0 %v763, 12
        %v846 = vpop.permute.xlu0 %845
        %847 = vrot.lane.b32.xlu0 %v764, 12
        %v848 = vpop.permute.xlu0 %847
        %849 = vrot.lane.b32.xlu0 %v765, 12
        %v850 = vpop.permute.xlu0 %849
        %851 = vrot.lane.b32.xlu0 %v766, 12
        %v852 = vpop.permute.xlu0 %851
        %853 = vrot.lane.b32.xlu0 %v767, 12
        %v854 = vpop.permute.xlu0 %853
        %855 = vrot.lane.b32.xlu0 %v768, 12
        %v856 = vpop.permute.xlu0 %855
        %857 = vrot.lane.b32.xlu0 %v769, 12
        %v858 = vpop.permute.xlu0 %857
        %859 = vrot.lane.b32.xlu0 %v770, 12
        %v860 = vpop.permute.xlu0 %859
        %861 = vrot.lane.b32.xlu0 %v771, 12
        %v862 = vpop.permute.xlu0 %861
        %863 = vrot.lane.b32.xlu0 %v772, 12
        %v864 = vpop.permute.xlu0 %863
        %865 = vrot.lane.b32.xlu0 %v773, 12
        %v866 = vpop.permute.xlu0 %865
        %867 = vrot.lane.b32.xlu0 %v774, 12
        %v868 = vpop.permute.xlu0 %867
        %869 = vrot.lane.b32.xlu0 %v775, 12
        %v870 = vpop.permute.xlu0 %869
        %871 = vrot.lane.b32.xlu0 %v776, 12
        %v872 = vpop.permute.xlu0 %871
        %vm905 = vcmask 130144
        %906 = vst.msk [vmem:[#allocation3] sm:$0xff] %vm905, %v810
        %907 = vst.msk [vmem:[#allocation3 + $0x8] sm:$0xff] %vm905, %v812
        %908 = vst.msk [vmem:[#allocation3 + $0x10] sm:$0xff] %vm905, %v814
        %909 = vst.msk [vmem:[#allocation3 + $0x18] sm:$0xff] %vm905, %v816
        %910 = vst.msk [vmem:[#allocation3 + $0x20] sm:$0xff] %vm905, %v818
        %911 = vst.msk [vmem:[#allocation3 + $0x28] sm:$0xff] %vm905, %v820
        %912 = vst.msk [vmem:[#allocation3 + $0x30] sm:$0xff] %vm905, %v822
        %913 = vst.msk [vmem:[#allocation3 + $0x38] sm:$0xff] %vm905, %v824
        %914 = vst.msk [vmem:[#allocation3 + $0x40] sm:$0xff] %vm905, %v826
        %915 = vst.msk [vmem:[#allocation3 + $0x48] sm:$0xff] %vm905, %v828
        %916 = vst.msk [vmem:[#allocation3 + $0x50] sm:$0xff] %vm905, %v830
        %917 = vst.msk [vmem:[#allocation3 + $0x58] sm:$0xff] %vm905, %v832
        %918 = vst.msk [vmem:[#allocation3 + $0x60] sm:$0xff] %vm905, %v834
        %919 = vst.msk [vmem:[#allocation3 + $0x68] sm:$0xff] %vm905, %v836
        %920 = vst.msk [vmem:[#allocation3 + $0x70] sm:$0xff] %vm905, %v838
        %921 = vst.msk [vmem:[#allocation3 + $0x78] sm:$0xff] %vm905, %v840
        %922 = vst.msk [vmem:[#allocation3 + $0x80] sm:$0xff] %vm905, %v842
        %923 = vst.msk [vmem:[#allocation3 + $0x88] sm:$0xff] %vm905, %v844
        %924 = vst.msk [vmem:[#allocation3 + $0x90] sm:$0xff] %vm905, %v846
        %925 = vst.msk [vmem:[#allocation3 + $0x98] sm:$0xff] %vm905, %v848
        %926 = vst.msk [vmem:[#allocation3 + $0xa0] sm:$0xff] %vm905, %v850
        %927 = vst.msk [vmem:[#allocation3 + $0xa8] sm:$0xff] %vm905, %v852
        %928 = vst.msk [vmem:[#allocation3 + $0xb0] sm:$0xff] %vm905, %v854
        %929 = vst.msk [vmem:[#allocation3 + $0xb8] sm:$0xff] %vm905, %v856
        %930 = vst.msk [vmem:[#allocation3 + $0xc0] sm:$0xff] %vm905, %v858
        %931 = vst.msk [vmem:[#allocation3 + $0xc8] sm:$0xff] %vm905, %v860
        %932 = vst.msk [vmem:[#allocation3 + $0xd0] sm:$0xff] %vm905, %v862
        %933 = vst.msk [vmem:[#allocation3 + $0xd8] sm:$0xff] %vm905, %v864
        %934 = vst.msk [vmem:[#allocation3 + $0xe0] sm:$0xff] %vm905, %v866
        %935 = vst.msk [vmem:[#allocation3 + $0xe8] sm:$0xff] %vm905, %v868
        %936 = vst.msk [vmem:[#allocation3 + $0xf0] sm:$0xff] %vm905, %v870
        %937 = vst.msk [vmem:[#allocation3 + $0xf8] sm:$0xff] %vm905, %v872
        %v938 = vld [vmem:[%s261 + $0x1] sm:$0xff]
        %v939 = vld [vmem:[%s261 + $0x9] sm:$0xff]
        %v940 = vld [vmem:[%s261 + $0x19] sm:$0xff]
        %v941 = vld [vmem:[%s261 + $0x21] sm:$0xff]
        %v942 = vld [vmem:[%s261 + $0x31] sm:$0xff]
        %v943 = vld [vmem:[%s261 + $0x39] sm:$0xff]
        %v944 = vld [vmem:[%s261 + $0x49] sm:$0xff]
        %v945 = vld [vmem:[%s261 + $0x51] sm:$0xff]
        %v946 = vld [vmem:[%s261 + $0x61] sm:$0xff]
        %v947 = vld [vmem:[%s261 + $0x69] sm:$0xff]
        %v948 = vld [vmem:[%s261 + $0x79] sm:$0xff]
        %v949 = vld [vmem:[%s261 + $0x81] sm:$0xff]
        %v950 = vld [vmem:[%s261 + $0x91] sm:$0xff]
        %v951 = vld [vmem:[%s261 + $0x99] sm:$0xff]
        %v952 = vld [vmem:[%s261 + $0xa9] sm:$0xff]
        %v953 = vld [vmem:[%s261 + $0xb1] sm:$0xff]
        %v954 = vld [vmem:[%s261 + $0xc1] sm:$0xff]
        %v955 = vld [vmem:[%s261 + $0xc9] sm:$0xff]
        %v956 = vld [vmem:[%s261 + $0xd9] sm:$0xff]
        %v957 = vld [vmem:[%s261 + $0xe1] sm:$0xff]
        %v958 = vld [vmem:[%s261 + $0xf1] sm:$0xff]
        %v959 = vld [vmem:[%s261 + $0xf9] sm:$0xff]
        %v960 = vld [vmem:[%s261 + $0x109] sm:$0xff]
        %v961 = vld [vmem:[%s261 + $0x111] sm:$0xff]
        %v962 = vld [vmem:[%s261 + $0x121] sm:$0xff]
        %v963 = vld [vmem:[%s261 + $0x129] sm:$0xff]
        %v964 = vld [vmem:[%s261 + $0x139] sm:$0xff]
        %v965 = vld [vmem:[%s261 + $0x141] sm:$0xff]
        %v966 = vld [vmem:[%s261 + $0x151] sm:$0xff]
        %v967 = vld [vmem:[%s261 + $0x159] sm:$0xff]
        %v968 = vld [vmem:[%s261 + $0x169] sm:$0xff]
        %v969 = vld [vmem:[%s261 + $0x171] sm:$0xff]
        %1002 = vrot.lane.b32.xlu0 %v938, 16
        %v1003 = vpop.permute.xlu0 %1002
        %1004 = vrot.lane.b32.xlu0 %v939, 16
        %v1005 = vpop.permute.xlu0 %1004
        %1006 = vrot.lane.b32.xlu0 %v940, 16
        %v1007 = vpop.permute.xlu0 %1006
        %1008 = vrot.lane.b32.xlu0 %v941, 16
        %v1009 = vpop.permute.xlu0 %1008
        %1010 = vrot.lane.b32.xlu0 %v942, 16
        %v1011 = vpop.permute.xlu0 %1010
        %1012 = vrot.lane.b32.xlu0 %v943, 16
        %v1013 = vpop.permute.xlu0 %1012
        %1014 = vrot.lane.b32.xlu0 %v944, 16
        %v1015 = vpop.permute.xlu0 %1014
        %1016 = vrot.lane.b32.xlu0 %v945, 16
        %v1017 = vpop.permute.xlu0 %1016
        %1018 = vrot.lane.b32.xlu0 %v946, 16
        %v1019 = vpop.permute.xlu0 %1018
        %1020 = vrot.lane.b32.xlu0 %v947, 16
        %v1021 = vpop.permute.xlu0 %1020
        %1022 = vrot.lane.b32.xlu0 %v948, 16
        %v1023 = vpop.permute.xlu0 %1022
        %1024 = vrot.lane.b32.xlu0 %v949, 16
        %v1025 = vpop.permute.xlu0 %1024
        %1026 = vrot.lane.b32.xlu0 %v950, 16
        %v1027 = vpop.permute.xlu0 %1026
        %1028 = vrot.lane.b32.xlu0 %v951, 16
        %v1029 = vpop.permute.xlu0 %1028
        %1030 = vrot.lane.b32.xlu0 %v952, 16
        %v1031 = vpop.permute.xlu0 %1030
        %1032 = vrot.lane.b32.xlu0 %v953, 16
        %v1033 = vpop.permute.xlu0 %1032
        %1034 = vrot.lane.b32.xlu0 %v954, 16
        %v1035 = vpop.permute.xlu0 %1034
        %1036 = vrot.lane.b32.xlu0 %v955, 16
        %v1037 = vpop.permute.xlu0 %1036
        %1038 = vrot.lane.b32.xlu0 %v956, 16
        %v1039 = vpop.permute.xlu0 %1038
        %1040 = vrot.lane.b32.xlu0 %v957, 16
        %v1041 = vpop.permute.xlu0 %1040
        %1042 = vrot.lane.b32.xlu0 %v958, 16
        %v1043 = vpop.permute.xlu0 %1042
        %1044 = vrot.lane.b32.xlu0 %v959, 16
        %v1045 = vpop.permute.xlu0 %1044
        %1046 = vrot.lane.b32.xlu0 %v960, 16
        %v1047 = vpop.permute.xlu0 %1046
        %1048 = vrot.lane.b32.xlu0 %v961, 16
        %v1049 = vpop.permute.xlu0 %1048
        %1050 = vrot.lane.b32.xlu0 %v962, 16
        %v1051 = vpop.permute.xlu0 %1050
        %1052 = vrot.lane.b32.xlu0 %v963, 16
        %v1053 = vpop.permute.xlu0 %1052
        %1054 = vrot.lane.b32.xlu0 %v964, 16
        %v1055 = vpop.permute.xlu0 %1054
        %1056 = vrot.lane.b32.xlu0 %v965, 16
        %v1057 = vpop.permute.xlu0 %1056
        %1058 = vrot.lane.b32.xlu0 %v966, 16
        %v1059 = vpop.permute.xlu0 %1058
        %1060 = vrot.lane.b32.xlu0 %v967, 16
        %v1061 = vpop.permute.xlu0 %1060
        %1062 = vrot.lane.b32.xlu0 %v968, 16
        %v1063 = vpop.permute.xlu0 %1062
        %1064 = vrot.lane.b32.xlu0 %v969, 16
        %v1065 = vpop.permute.xlu0 %1064
        %vm1098 = vcmask 162944
        %1099 = vst.msk [vmem:[#allocation3] sm:$0xff] %vm1098, %v1003
        %1100 = vst.msk [vmem:[#allocation3 + $0x8] sm:$0xff] %vm1098, %v1005
        %1101 = vst.msk [vmem:[#allocation3 + $0x10] sm:$0xff] %vm1098, %v1007
        %1102 = vst.msk [vmem:[#allocation3 + $0x18] sm:$0xff] %vm1098, %v1009
        %1103 = vst.msk [vmem:[#allocation3 + $0x20] sm:$0xff] %vm1098, %v1011
        %1104 = vst.msk [vmem:[#allocation3 + $0x28] sm:$0xff] %vm1098, %v1013
        %1105 = vst.msk [vmem:[#allocation3 + $0x30] sm:$0xff] %vm1098, %v1015
        %1106 = vst.msk [vmem:[#allocation3 + $0x38] sm:$0xff] %vm1098, %v1017
        %1107 = vst.msk [vmem:[#allocation3 + $0x40] sm:$0xff] %vm1098, %v1019
        %1108 = vst.msk [vmem:[#allocation3 + $0x48] sm:$0xff] %vm1098, %v1021
        %1109 = vst.msk [vmem:[#allocation3 + $0x50] sm:$0xff] %vm1098, %v1023
        %1110 = vst.msk [vmem:[#allocation3 + $0x58] sm:$0xff] %vm1098, %v1025
        %1111 = vst.msk [vmem:[#allocation3 + $0x60] sm:$0xff] %vm1098, %v1027
        %1112 = vst.msk [vmem:[#allocation3 + $0x68] sm:$0xff] %vm1098, %v1029
        %1113 = vst.msk [vmem:[#allocation3 + $0x70] sm:$0xff] %vm1098, %v1031
        %1114 = vst.msk [vmem:[#allocation3 + $0x78] sm:$0xff] %vm1098, %v1033
        %1115 = vst.msk [vmem:[#allocation3 + $0x80] sm:$0xff] %vm1098, %v1035
        %1116 = vst.msk [vmem:[#allocation3 + $0x88] sm:$0xff] %vm1098, %v1037
        %1117 = vst.msk [vmem:[#allocation3 + $0x90] sm:$0xff] %vm1098, %v1039
        %1118 = vst.msk [vmem:[#allocation3 + $0x98] sm:$0xff] %vm1098, %v1041
        %1119 = vst.msk [vmem:[#allocation3 + $0xa0] sm:$0xff] %vm1098, %v1043
        %1120 = vst.msk [vmem:[#allocation3 + $0xa8] sm:$0xff] %vm1098, %v1045
        %1121 = vst.msk [vmem:[#allocation3 + $0xb0] sm:$0xff] %vm1098, %v1047
        %1122 = vst.msk [vmem:[#allocation3 + $0xb8] sm:$0xff] %vm1098, %v1049
        %1123 = vst.msk [vmem:[#allocation3 + $0xc0] sm:$0xff] %vm1098, %v1051
        %1124 = vst.msk [vmem:[#allocation3 + $0xc8] sm:$0xff] %vm1098, %v1053
        %1125 = vst.msk [vmem:[#allocation3 + $0xd0] sm:$0xff] %vm1098, %v1055
        %1126 = vst.msk [vmem:[#allocation3 + $0xd8] sm:$0xff] %vm1098, %v1057
        %1127 = vst.msk [vmem:[#allocation3 + $0xe0] sm:$0xff] %vm1098, %v1059
        %1128 = vst.msk [vmem:[#allocation3 + $0xe8] sm:$0xff] %vm1098, %v1061
        %1129 = vst.msk [vmem:[#allocation3 + $0xf0] sm:$0xff] %vm1098, %v1063
        %1130 = vst.msk [vmem:[#allocation3 + $0xf8] sm:$0xff] %vm1098, %v1065
        %v1131 = vld [vmem:[%s261 + $0x2] sm:$0xff]
        %v1132 = vld [vmem:[%s261 + $0xa] sm:$0xff]
        %v1133 = vld [vmem:[%s261 + $0x1a] sm:$0xff]
        %v1134 = vld [vmem:[%s261 + $0x22] sm:$0xff]
        %v1135 = vld [vmem:[%s261 + $0x32] sm:$0xff]
        %v1136 = vld [vmem:[%s261 + $0x3a] sm:$0xff]
        %v1137 = vld [vmem:[%s261 + $0x4a] sm:$0xff]
        %v1138 = vld [vmem:[%s261 + $0x52] sm:$0xff]
        %v1139 = vld [vmem:[%s261 + $0x62] sm:$0xff]
        %v1140 = vld [vmem:[%s261 + $0x6a] sm:$0xff]
        %v1141 = vld [vmem:[%s261 + $0x7a] sm:$0xff]
        %v1142 = vld [vmem:[%s261 + $0x82] sm:$0xff]
        %v1143 = vld [vmem:[%s261 + $0x92] sm:$0xff]
        %v1144 = vld [vmem:[%s261 + $0x9a] sm:$0xff]
        %v1145 = vld [vmem:[%s261 + $0xaa] sm:$0xff]
        %v1146 = vld [vmem:[%s261 + $0xb2] sm:$0xff]
        %v1147 = vld [vmem:[%s261 + $0xc2] sm:$0xff]
        %v1148 = vld [vmem:[%s261 + $0xca] sm:$0xff]
        %v1149 = vld [vmem:[%s261 + $0xda] sm:$0xff]
        %v1150 = vld [vmem:[%s261 + $0xe2] sm:$0xff]
        %v1151 = vld [vmem:[%s261 + $0xf2] sm:$0xff]
        %v1152 = vld [vmem:[%s261 + $0xfa] sm:$0xff]
        %v1153 = vld [vmem:[%s261 + $0x10a] sm:$0xff]
        %v1154 = vld [vmem:[%s261 + $0x112] sm:$0xff]
        %v1155 = vld [vmem:[%s261 + $0x122] sm:$0xff]
        %v1156 = vld [vmem:[%s261 + $0x12a] sm:$0xff]
        %v1157 = vld [vmem:[%s261 + $0x13a] sm:$0xff]
        %v1158 = vld [vmem:[%s261 + $0x142] sm:$0xff]
        %v1159 = vld [vmem:[%s261 + $0x152] sm:$0xff]
        %v1160 = vld [vmem:[%s261 + $0x15a] sm:$0xff]
        %v1161 = vld [vmem:[%s261 + $0x16a] sm:$0xff]
        %v1162 = vld [vmem:[%s261 + $0x172] sm:$0xff]
        %1195 = vrot.lane.b32.xlu0 %v1131, 20
        %v1196 = vpop.permute.xlu0 %1195
        %1197 = vrot.lane.b32.xlu0 %v1132, 20
        %v1198 = vpop.permute.xlu0 %1197
        %1199 = vrot.lane.b32.xlu0 %v1133, 20
        %v1200 = vpop.permute.xlu0 %1199
        %1201 = vrot.lane.b32.xlu0 %v1134, 20
        %v1202 = vpop.permute.xlu0 %1201
        %1203 = vrot.lane.b32.xlu0 %v1135, 20
        %v1204 = vpop.permute.xlu0 %1203
        %1205 = vrot.lane.b32.xlu0 %v1136, 20
        %v1206 = vpop.permute.xlu0 %1205
        %1207 = vrot.lane.b32.xlu0 %v1137, 20
        %v1208 = vpop.permute.xlu0 %1207
        %1209 = vrot.lane.b32.xlu0 %v1138, 20
        %v1210 = vpop.permute.xlu0 %1209
        %1211 = vrot.lane.b32.xlu0 %v1139, 20
        %v1212 = vpop.permute.xlu0 %1211
        %1213 = vrot.lane.b32.xlu0 %v1140, 20
        %v1214 = vpop.permute.xlu0 %1213
        %1215 = vrot.lane.b32.xlu0 %v1141, 20
        %v1216 = vpop.permute.xlu0 %1215
        %1217 = vrot.lane.b32.xlu0 %v1142, 20
        %v1218 = vpop.permute.xlu0 %1217
        %1219 = vrot.lane.b32.xlu0 %v1143, 20
        %v1220 = vpop.permute.xlu0 %1219
        %1221 = vrot.lane.b32.xlu0 %v1144, 20
        %v1222 = vpop.permute.xlu0 %1221
        %1223 = vrot.lane.b32.xlu0 %v1145, 20
        %v1224 = vpop.permute.xlu0 %1223
        %1225 = vrot.lane.b32.xlu0 %v1146, 20
        %v1226 = vpop.permute.xlu0 %1225
        %1227 = vrot.lane.b32.xlu0 %v1147, 20
        %v1228 = vpop.permute.xlu0 %1227
        %1229 = vrot.lane.b32.xlu0 %v1148, 20
        %v1230 = vpop.permute.xlu0 %1229
        %1231 = vrot.lane.b32.xlu0 %v1149, 20
        %v1232 = vpop.permute.xlu0 %1231
        %1233 = vrot.lane.b32.xlu0 %v1150, 20
        %v1234 = vpop.permute.xlu0 %1233
        %1235 = vrot.lane.b32.xlu0 %v1151, 20
        %v1236 = vpop.permute.xlu0 %1235
        %1237 = vrot.lane.b32.xlu0 %v1152, 20
        %v1238 = vpop.permute.xlu0 %1237
        %1239 = vrot.lane.b32.xlu0 %v1153, 20
        %v1240 = vpop.permute.xlu0 %1239
        %1241 = vrot.lane.b32.xlu0 %v1154, 20
        %v1242 = vpop.permute.xlu0 %1241
        %1243 = vrot.lane.b32.xlu0 %v1155, 20
        %v1244 = vpop.permute.xlu0 %1243
        %1245 = vrot.lane.b32.xlu0 %v1156, 20
        %v1246 = vpop.permute.xlu0 %1245
        %1247 = vrot.lane.b32.xlu0 %v1157, 20
        %v1248 = vpop.permute.xlu0 %1247
        %1249 = vrot.lane.b32.xlu0 %v1158, 20
        %v1250 = vpop.permute.xlu0 %1249
        %1251 = vrot.lane.b32.xlu0 %v1159, 20
        %v1252 = vpop.permute.xlu0 %1251
        %1253 = vrot.lane.b32.xlu0 %v1160, 20
        %v1254 = vpop.permute.xlu0 %1253
        %1255 = vrot.lane.b32.xlu0 %v1161, 20
        %v1256 = vpop.permute.xlu0 %1255
        %1257 = vrot.lane.b32.xlu0 %v1162, 20
        %v1258 = vpop.permute.xlu0 %1257
        %vm1291 = vcmask 195744
        %1292 = vst.msk [vmem:[#allocation3] sm:$0xff] %vm1291, %v1196
        %1293 = vst.msk [vmem:[#allocation3 + $0x8] sm:$0xff] %vm1291, %v1198
        %1294 = vst.msk [vmem:[#allocation3 + $0x10] sm:$0xff] %vm1291, %v1200
        %1295 = vst.msk [vmem:[#allocation3 + $0x18] sm:$0xff] %vm1291, %v1202
        %1296 = vst.msk [vmem:[#allocation3 + $0x20] sm:$0xff] %vm1291, %v1204
        %1297 = vst.msk [vmem:[#allocation3 + $0x28] sm:$0xff] %vm1291, %v1206
        %1298 = vst.msk [vmem:[#allocation3 + $0x30] sm:$0xff] %vm1291, %v1208
        %1299 = vst.msk [vmem:[#allocation3 + $0x38] sm:$0xff] %vm1291, %v1210
        %1300 = vst.msk [vmem:[#allocation3 + $0x40] sm:$0xff] %vm1291, %v1212
        %1301 = vst.msk [vmem:[#allocation3 + $0x48] sm:$0xff] %vm1291, %v1214
        %1302 = vst.msk [vmem:[#allocation3 + $0x50] sm:$0xff] %vm1291, %v1216
        %1303 = vst.msk [vmem:[#allocation3 + $0x58] sm:$0xff] %vm1291, %v1218
        %1304 = vst.msk [vmem:[#allocation3 + $0x60] sm:$0xff] %vm1291, %v1220
        %1305 = vst.msk [vmem:[#allocation3 + $0x68] sm:$0xff] %vm1291, %v1222
        %1306 = vst.msk [vmem:[#allocation3 + $0x70] sm:$0xff] %vm1291, %v1224
        %1307 = vst.msk [vmem:[#allocation3 + $0x78] sm:$0xff] %vm1291, %v1226
        %1308 = vst.msk [vmem:[#allocation3 + $0x80] sm:$0xff] %vm1291, %v1228
        %1309 = vst.msk [vmem:[#allocation3 + $0x88] sm:$0xff] %vm1291, %v1230
        %1310 = vst.msk [vmem:[#allocation3 + $0x90] sm:$0xff] %vm1291, %v1232
        %1311 = vst.msk [vmem:[#allocation3 + $0x98] sm:$0xff] %vm1291, %v1234
        %1312 = vst.msk [vmem:[#allocation3 + $0xa0] sm:$0xff] %vm1291, %v1236
        %1313 = vst.msk [vmem:[#allocation3 + $0xa8] sm:$0xff] %vm1291, %v1238
        %1314 = vst.msk [vmem:[#allocation3 + $0xb0] sm:$0xff] %vm1291, %v1240
        %1315 = vst.msk [vmem:[#allocation3 + $0xb8] sm:$0xff] %vm1291, %v1242
        %1316 = vst.msk [vmem:[#allocation3 + $0xc0] sm:$0xff] %vm1291, %v1244
        %1317 = vst.msk [vmem:[#allocation3 + $0xc8] sm:$0xff] %vm1291, %v1246
        %1318 = vst.msk [vmem:[#allocation3 + $0xd0] sm:$0xff] %vm1291, %v1248
        %1319 = vst.msk [vmem:[#allocation3 + $0xd8] sm:$0xff] %vm1291, %v1250
        %1320 = vst.msk [vmem:[#allocation3 + $0xe0] sm:$0xff] %vm1291, %v1252
        %1321 = vst.msk [vmem:[#allocation3 + $0xe8] sm:$0xff] %vm1291, %v1254
        %1322 = vst.msk [vmem:[#allocation3 + $0xf0] sm:$0xff] %vm1291, %v1256
        %1323 = vst.msk [vmem:[#allocation3 + $0xf8] sm:$0xff] %vm1291, %v1258
        %s1324 = scalar_lea.vmem [#allocation2], 48
        %v1325 = vld [vmem:[%s1324] sm:$0xff]
        %v1326 = vld [vmem:[%s1324 + $0x8] sm:$0xff]
        %v1327 = vld [vmem:[%s1324 + $0x18] sm:$0xff]
        %v1328 = vld [vmem:[%s1324 + $0x20] sm:$0xff]
        %v1329 = vld [vmem:[%s1324 + $0x30] sm:$0xff]
        %v1330 = vld [vmem:[%s1324 + $0x38] sm:$0xff]
        %v1331 = vld [vmem:[%s1324 + $0x48] sm:$0xff]
        %v1332 = vld [vmem:[%s1324 + $0x50] sm:$0xff]
        %v1333 = vld [vmem:[%s1324 + $0x60] sm:$0xff]
        %v1334 = vld [vmem:[%s1324 + $0x68] sm:$0xff]
        %v1335 = vld [vmem:[%s1324 + $0x78] sm:$0xff]
        %v1336 = vld [vmem:[%s1324 + $0x80] sm:$0xff]
        %v1337 = vld [vmem:[%s1324 + $0x90] sm:$0xff]
        %v1338 = vld [vmem:[%s1324 + $0x98] sm:$0xff]
        %v1339 = vld [vmem:[%s1324 + $0xa8] sm:$0xff]
        %v1340 = vld [vmem:[%s1324 + $0xb0] sm:$0xff]
        %v1341 = vld [vmem:[%s1324 + $0xc0] sm:$0xff]
        %v1342 = vld [vmem:[%s1324 + $0xc8] sm:$0xff]
        %v1343 = vld [vmem:[%s1324 + $0xd8] sm:$0xff]
        %v1344 = vld [vmem:[%s1324 + $0xe0] sm:$0xff]
        %v1345 = vld [vmem:[%s1324 + $0xf0] sm:$0xff]
        %v1346 = vld [vmem:[%s1324 + $0xf8] sm:$0xff]
        %v1347 = vld [vmem:[%s1324 + $0x108] sm:$0xff]
        %v1348 = vld [vmem:[%s1324 + $0x110] sm:$0xff]
        %v1349 = vld [vmem:[%s1324 + $0x120] sm:$0xff]
        %v1350 = vld [vmem:[%s1324 + $0x128] sm:$0xff]
        %v1351 = vld [vmem:[%s1324 + $0x138] sm:$0xff]
        %v1352 = vld [vmem:[%s1324 + $0x140] sm:$0xff]
        %v1353 = vld [vmem:[%s1324 + $0x150] sm:$0xff]
        %v1354 = vld [vmem:[%s1324 + $0x158] sm:$0xff]
        %v1355 = vld [vmem:[%s1324 + $0x168] sm:$0xff]
        %v1356 = vld [vmem:[%s1324 + $0x170] sm:$0xff]
        %1389 = vrot.lane.b32.xlu0 %v1325, 24
        %v1390 = vpop.permute.xlu0 %1389
        %1391 = vrot.lane.b32.xlu0 %v1326, 24
        %v1392 = vpop.permute.xlu0 %1391
        %1393 = vrot.lane.b32.xlu0 %v1327, 24
        %v1394 = vpop.permute.xlu0 %1393
        %1395 = vrot.lane.b32.xlu0 %v1328, 24
        %v1396 = vpop.permute.xlu0 %1395
        %1397 = vrot.lane.b32.xlu0 %v1329, 24
        %v1398 = vpop.permute.xlu0 %1397
        %1399 = vrot.lane.b32.xlu0 %v1330, 24
        %v1400 = vpop.permute.xlu0 %1399
        %1401 = vrot.lane.b32.xlu0 %v1331, 24
        %v1402 = vpop.permute.xlu0 %1401
        %1403 = vrot.lane.b32.xlu0 %v1332, 24
        %v1404 = vpop.permute.xlu0 %1403
        %1405 = vrot.lane.b32.xlu0 %v1333, 24
        %v1406 = vpop.permute.xlu0 %1405
        %1407 = vrot.lane.b32.xlu0 %v1334, 24
        %v1408 = vpop.permute.xlu0 %1407
        %1409 = vrot.lane.b32.xlu0 %v1335, 24
        %v1410 = vpop.permute.xlu0 %1409
        %1411 = vrot.lane.b32.xlu0 %v1336, 24
        %v1412 = vpop.permute.xlu0 %1411
        %1413 = vrot.lane.b32.xlu0 %v1337, 24
        %v1414 = vpop.permute.xlu0 %1413
        %1415 = vrot.lane.b32.xlu0 %v1338, 24
        %v1416 = vpop.permute.xlu0 %1415
        %1417 = vrot.lane.b32.xlu0 %v1339, 24
        %v1418 = vpop.permute.xlu0 %1417
        %1419 = vrot.lane.b32.xlu0 %v1340, 24
        %v1420 = vpop.permute.xlu0 %1419
        %1421 = vrot.lane.b32.xlu0 %v1341, 24
        %v1422 = vpop.permute.xlu0 %1421
        %1423 = vrot.lane.b32.xlu0 %v1342, 24
        %v1424 = vpop.permute.xlu0 %1423
        %1425 = vrot.lane.b32.xlu0 %v1343, 24
        %v1426 = vpop.permute.xlu0 %1425
        %1427 = vrot.lane.b32.xlu0 %v1344, 24
        %v1428 = vpop.permute.xlu0 %1427
        %1429 = vrot.lane.b32.xlu0 %v1345, 24
        %v1430 = vpop.permute.xlu0 %1429
        %1431 = vrot.lane.b32.xlu0 %v1346, 24
        %v1432 = vpop.permute.xlu0 %1431
        %1433 = vrot.lane.b32.xlu0 %v1347, 24
        %v1434 = vpop.permute.xlu0 %1433
        %1435 = vrot.lane.b32.xlu0 %v1348, 24
        %v1436 = vpop.permute.xlu0 %1435
        %1437 = vrot.lane.b32.xlu0 %v1349, 24
        %v1438 = vpop.permute.xlu0 %1437
        %1439 = vrot.lane.b32.xlu0 %v1350, 24
        %v1440 = vpop.permute.xlu0 %1439
        %1441 = vrot.lane.b32.xlu0 %v1351, 24
        %v1442 = vpop.permute.xlu0 %1441
        %1443 = vrot.lane.b32.xlu0 %v1352, 24
        %v1444 = vpop.permute.xlu0 %1443
        %1445 = vrot.lane.b32.xlu0 %v1353, 24
        %v1446 = vpop.permute.xlu0 %1445
        %1447 = vrot.lane.b32.xlu0 %v1354, 24
        %v1448 = vpop.permute.xlu0 %1447
        %1449 = vrot.lane.b32.xlu0 %v1355, 24
        %v1450 = vpop.permute.xlu0 %1449
        %1451 = vrot.lane.b32.xlu0 %v1356, 24
        %v1452 = vpop.permute.xlu0 %1451
        %vm1485 = vcmask 228544
        %1486 = vst.msk [vmem:[#allocation3] sm:$0xff] %vm1485, %v1390
        %1487 = vst.msk [vmem:[#allocation3 + $0x8] sm:$0xff] %vm1485, %v1392
        %1488 = vst.msk [vmem:[#allocation3 + $0x10] sm:$0xff] %vm1485, %v1394
        %1489 = vst.msk [vmem:[#allocation3 + $0x18] sm:$0xff] %vm1485, %v1396
        %1490 = vst.msk [vmem:[#allocation3 + $0x20] sm:$0xff] %vm1485, %v1398
        %1491 = vst.msk [vmem:[#allocation3 + $0x28] sm:$0xff] %vm1485, %v1400
        %1492 = vst.msk [vmem:[#allocation3 + $0x30] sm:$0xff] %vm1485, %v1402
        %1493 = vst.msk [vmem:[#allocation3 + $0x38] sm:$0xff] %vm1485, %v1404
        %1494 = vst.msk [vmem:[#allocation3 + $0x40] sm:$0xff] %vm1485, %v1406
        %1495 = vst.msk [vmem:[#allocation3 + $0x48] sm:$0xff] %vm1485, %v1408
        %1496 = vst.msk [vmem:[#allocation3 + $0x50] sm:$0xff] %vm1485, %v1410
        %1497 = vst.msk [vmem:[#allocation3 + $0x58] sm:$0xff] %vm1485, %v1412
        %1498 = vst.msk [vmem:[#allocation3 + $0x60] sm:$0xff] %vm1485, %v1414
        %1499 = vst.msk [vmem:[#allocation3 + $0x68] sm:$0xff] %vm1485, %v1416
        %1500 = vst.msk [vmem:[#allocation3 + $0x70] sm:$0xff] %vm1485, %v1418
        %1501 = vst.msk [vmem:[#allocation3 + $0x78] sm:$0xff] %vm1485, %v1420
        %1502 = vst.msk [vmem:[#allocation3 + $0x80] sm:$0xff] %vm1485, %v1422
        %1503 = vst.msk [vmem:[#allocation3 + $0x88] sm:$0xff] %vm1485, %v1424
        %1504 = vst.msk [vmem:[#allocation3 + $0x90] sm:$0xff] %vm1485, %v1426
        %1505 = vst.msk [vmem:[#allocation3 + $0x98] sm:$0xff] %vm1485, %v1428
        %1506 = vst.msk [vmem:[#allocation3 + $0xa0] sm:$0xff] %vm1485, %v1430
        %1507 = vst.msk [vmem:[#allocation3 + $0xa8] sm:$0xff] %vm1485, %v1432
        %1508 = vst.msk [vmem:[#allocation3 + $0xb0] sm:$0xff] %vm1485, %v1434
        %1509 = vst.msk [vmem:[#allocation3 + $0xb8] sm:$0xff] %vm1485, %v1436
        %1510 = vst.msk [vmem:[#allocation3 + $0xc0] sm:$0xff] %vm1485, %v1438
        %1511 = vst.msk [vmem:[#allocation3 + $0xc8] sm:$0xff] %vm1485, %v1440
        %1512 = vst.msk [vmem:[#allocation3 + $0xd0] sm:$0xff] %vm1485, %v1442
        %1513 = vst.msk [vmem:[#allocation3 + $0xd8] sm:$0xff] %vm1485, %v1444
        %1514 = vst.msk [vmem:[#allocation3 + $0xe0] sm:$0xff] %vm1485, %v1446
        %1515 = vst.msk [vmem:[#allocation3 + $0xe8] sm:$0xff] %vm1485, %v1448
        %1516 = vst.msk [vmem:[#allocation3 + $0xf0] sm:$0xff] %vm1485, %v1450
        %1517 = vst.msk [vmem:[#allocation3 + $0xf8] sm:$0xff] %vm1485, %v1452
        %v1518 = vld [vmem:[%s1324 + $0x1] sm:$0xff]
        %v1519 = vld [vmem:[%s1324 + $0x9] sm:$0xff]
        %v1520 = vld [vmem:[%s1324 + $0x19] sm:$0xff]
        %v1521 = vld [vmem:[%s1324 + $0x21] sm:$0xff]
        %v1522 = vld [vmem:[%s1324 + $0x31] sm:$0xff]
        %v1523 = vld [vmem:[%s1324 + $0x39] sm:$0xff]
        %v1524 = vld [vmem:[%s1324 + $0x49] sm:$0xff]
        %v1525 = vld [vmem:[%s1324 + $0x51] sm:$0xff]
        %v1526 = vld [vmem:[%s1324 + $0x61] sm:$0xff]
        %v1527 = vld [vmem:[%s1324 + $0x69] sm:$0xff]
        %v1528 = vld [vmem:[%s1324 + $0x79] sm:$0xff]
        %v1529 = vld [vmem:[%s1324 + $0x81] sm:$0xff]
        %v1530 = vld [vmem:[%s1324 + $0x91] sm:$0xff]
        %v1531 = vld [vmem:[%s1324 + $0x99] sm:$0xff]
        %v1532 = vld [vmem:[%s1324 + $0xa9] sm:$0xff]
        %v1533 = vld [vmem:[%s1324 + $0xb1] sm:$0xff]
        %v1534 = vld [vmem:[%s1324 + $0xc1] sm:$0xff]
        %v1535 = vld [vmem:[%s1324 + $0xc9] sm:$0xff]
        %v1536 = vld [vmem:[%s1324 + $0xd9] sm:$0xff]
        %v1537 = vld [vmem:[%s1324 + $0xe1] sm:$0xff]
        %v1538 = vld [vmem:[%s1324 + $0xf1] sm:$0xff]
        %v1539 = vld [vmem:[%s1324 + $0xf9] sm:$0xff]
        %v1540 = vld [vmem:[%s1324 + $0x109] sm:$0xff]
        %v1541 = vld [vmem:[%s1324 + $0x111] sm:$0xff]
        %v1542 = vld [vmem:[%s1324 + $0x121] sm:$0xff]
        %v1543 = vld [vmem:[%s1324 + $0x129] sm:$0xff]
        %v1544 = vld [vmem:[%s1324 + $0x139] sm:$0xff]
        %v1545 = vld [vmem:[%s1324 + $0x141] sm:$0xff]
        %v1546 = vld [vmem:[%s1324 + $0x151] sm:$0xff]
        %v1547 = vld [vmem:[%s1324 + $0x159] sm:$0xff]
        %v1548 = vld [vmem:[%s1324 + $0x169] sm:$0xff]
        %v1549 = vld [vmem:[%s1324 + $0x171] sm:$0xff]
        %1582 = vrot.lane.b32.xlu0 %v1518, 28
        %v1583 = vpop.permute.xlu0 %1582
        %1584 = vrot.lane.b32.xlu0 %v1519, 28
        %v1585 = vpop.permute.xlu0 %1584
        %1586 = vrot.lane.b32.xlu0 %v1520, 28
        %v1587 = vpop.permute.xlu0 %1586
        %1588 = vrot.lane.b32.xlu0 %v1521, 28
        %v1589 = vpop.permute.xlu0 %1588
        %1590 = vrot.lane.b32.xlu0 %v1522, 28
        %v1591 = vpop.permute.xlu0 %1590
        %1592 = vrot.lane.b32.xlu0 %v1523, 28
        %v1593 = vpop.permute.xlu0 %1592
        %1594 = vrot.lane.b32.xlu0 %v1524, 28
        %v1595 = vpop.permute.xlu0 %1594
        %1596 = vrot.lane.b32.xlu0 %v1525, 28
        %v1597 = vpop.permute.xlu0 %1596
        %1598 = vrot.lane.b32.xlu0 %v1526, 28
        %v1599 = vpop.permute.xlu0 %1598
        %1600 = vrot.lane.b32.xlu0 %v1527, 28
        %v1601 = vpop.permute.xlu0 %1600
        %1602 = vrot.lane.b32.xlu0 %v1528, 28
        %v1603 = vpop.permute.xlu0 %1602
        %1604 = vrot.lane.b32.xlu0 %v1529, 28
        %v1605 = vpop.permute.xlu0 %1604
        %1606 = vrot.lane.b32.xlu0 %v1530, 28
        %v1607 = vpop.permute.xlu0 %1606
        %1608 = vrot.lane.b32.xlu0 %v1531, 28
        %v1609 = vpop.permute.xlu0 %1608
        %1610 = vrot.lane.b32.xlu0 %v1532, 28
        %v1611 = vpop.permute.xlu0 %1610
        %1612 = vrot.lane.b32.xlu0 %v1533, 28
        %v1613 = vpop.permute.xlu0 %1612
        %1614 = vrot.lane.b32.xlu0 %v1534, 28
        %v1615 = vpop.permute.xlu0 %1614
        %1616 = vrot.lane.b32.xlu0 %v1535, 28
        %v1617 = vpop.permute.xlu0 %1616
        %1618 = vrot.lane.b32.xlu0 %v1536, 28
        %v1619 = vpop.permute.xlu0 %1618
        %1620 = vrot.lane.b32.xlu0 %v1537, 28
        %v1621 = vpop.permute.xlu0 %1620
        %1622 = vrot.lane.b32.xlu0 %v1538, 28
        %v1623 = vpop.permute.xlu0 %1622
        %1624 = vrot.lane.b32.xlu0 %v1539, 28
        %v1625 = vpop.permute.xlu0 %1624
        %1626 = vrot.lane.b32.xlu0 %v1540, 28
        %v1627 = vpop.permute.xlu0 %1626
        %1628 = vrot.lane.b32.xlu0 %v1541, 28
        %v1629 = vpop.permute.xlu0 %1628
        %1630 = vrot.lane.b32.xlu0 %v1542, 28
        %v1631 = vpop.permute.xlu0 %1630
        %1632 = vrot.lane.b32.xlu0 %v1543, 28
        %v1633 = vpop.permute.xlu0 %1632
        %1634 = vrot.lane.b32.xlu0 %v1544, 28
        %v1635 = vpop.permute.xlu0 %1634
        %1636 = vrot.lane.b32.xlu0 %v1545, 28
        %v1637 = vpop.permute.xlu0 %1636
        %1638 = vrot.lane.b32.xlu0 %v1546, 28
        %v1639 = vpop.permute.xlu0 %1638
        %1640 = vrot.lane.b32.xlu0 %v1547, 28
        %v1641 = vpop.permute.xlu0 %1640
        %1642 = vrot.lane.b32.xlu0 %v1548, 28
        %v1643 = vpop.permute.xlu0 %1642
        %1644 = vrot.lane.b32.xlu0 %v1549, 28
        %v1645 = vpop.permute.xlu0 %1644
        %vm1678 = vcmask 261344
        %1679 = vst.msk [vmem:[#allocation3] sm:$0xff] %vm1678, %v1583
        %1680 = vst.msk [vmem:[#allocation3 + $0x8] sm:$0xff] %vm1678, %v1585
        %1681 = vst.msk [vmem:[#allocation3 + $0x10] sm:$0xff] %vm1678, %v1587
        %1682 = vst.msk [vmem:[#allocation3 + $0x18] sm:$0xff] %vm1678, %v1589
        %1683 = vst.msk [vmem:[#allocation3 + $0x20] sm:$0xff] %vm1678, %v1591
        %1684 = vst.msk [vmem:[#allocation3 + $0x28] sm:$0xff] %vm1678, %v1593
        %1685 = vst.msk [vmem:[#allocation3 + $0x30] sm:$0xff] %vm1678, %v1595
        %1686 = vst.msk [vmem:[#allocation3 + $0x38] sm:$0xff] %vm1678, %v1597
        %1687 = vst.msk [vmem:[#allocation3 + $0x40] sm:$0xff] %vm1678, %v1599
        %1688 = vst.msk [vmem:[#allocation3 + $0x48] sm:$0xff] %vm1678, %v1601
        %1689 = vst.msk [vmem:[#allocation3 + $0x50] sm:$0xff] %vm1678, %v1603
        %1690 = vst.msk [vmem:[#allocation3 + $0x58] sm:$0xff] %vm1678, %v1605
        %1691 = vst.msk [vmem:[#allocation3 + $0x60] sm:$0xff] %vm1678, %v1607
        %1692 = vst.msk [vmem:[#allocation3 + $0x68] sm:$0xff] %vm1678, %v1609
        %1693 = vst.msk [vmem:[#allocation3 + $0x70] sm:$0xff] %vm1678, %v1611
        %1694 = vst.msk [vmem:[#allocation3 + $0x78] sm:$0xff] %vm1678, %v1613
        %1695 = vst.msk [vmem:[#allocation3 + $0x80] sm:$0xff] %vm1678, %v1615
        %1696 = vst.msk [vmem:[#allocation3 + $0x88] sm:$0xff] %vm1678, %v1617
        %1697 = vst.msk [vmem:[#allocation3 + $0x90] sm:$0xff] %vm1678, %v1619
        %1698 = vst.msk [vmem:[#allocation3 + $0x98] sm:$0xff] %vm1678, %v1621
        %1699 = vst.msk [vmem:[#allocation3 + $0xa0] sm:$0xff] %vm1678, %v1623
        %1700 = vst.msk [vmem:[#allocation3 + $0xa8] sm:$0xff] %vm1678, %v1625
        %1701 = vst.msk [vmem:[#allocation3 + $0xb0] sm:$0xff] %vm1678, %v1627
        %1702 = vst.msk [vmem:[#allocation3 + $0xb8] sm:$0xff] %vm1678, %v1629
        %1703 = vst.msk [vmem:[#allocation3 + $0xc0] sm:$0xff] %vm1678, %v1631
        %1704 = vst.msk [vmem:[#allocation3 + $0xc8] sm:$0xff] %vm1678, %v1633
        %1705 = vst.msk [vmem:[#allocation3 + $0xd0] sm:$0xff] %vm1678, %v1635
        %1706 = vst.msk [vmem:[#allocation3 + $0xd8] sm:$0xff] %vm1678, %v1637
        %1707 = vst.msk [vmem:[#allocation3 + $0xe0] sm:$0xff] %vm1678, %v1639
        %1708 = vst.msk [vmem:[#allocation3 + $0xe8] sm:$0xff] %vm1678, %v1641
        %1709 = vst.msk [vmem:[#allocation3 + $0xf0] sm:$0xff] %vm1678, %v1643
        %1710 = vst.msk [vmem:[#allocation3 + $0xf8] sm:$0xff] %vm1678, %v1645
        %v1711 = vld [vmem:[%s1324 + $0x2] sm:$0xff]
        %v1712 = vld [vmem:[%s1324 + $0xa] sm:$0xff]
        %v1713 = vld [vmem:[%s1324 + $0x1a] sm:$0xff]
        %v1714 = vld [vmem:[%s1324 + $0x22] sm:$0xff]
        %v1715 = vld [vmem:[%s1324 + $0x32] sm:$0xff]
        %v1716 = vld [vmem:[%s1324 + $0x3a] sm:$0xff]
        %v1717 = vld [vmem:[%s1324 + $0x4a] sm:$0xff]
        %v1718 = vld [vmem:[%s1324 + $0x52] sm:$0xff]
        %v1719 = vld [vmem:[%s1324 + $0x62] sm:$0xff]
        %v1720 = vld [vmem:[%s1324 + $0x6a] sm:$0xff]
        %v1721 = vld [vmem:[%s1324 + $0x7a] sm:$0xff]
        %v1722 = vld [vmem:[%s1324 + $0x82] sm:$0xff]
        %v1723 = vld [vmem:[%s1324 + $0x92] sm:$0xff]
        %v1724 = vld [vmem:[%s1324 + $0x9a] sm:$0xff]
        %v1725 = vld [vmem:[%s1324 + $0xaa] sm:$0xff]
        %v1726 = vld [vmem:[%s1324 + $0xb2] sm:$0xff]
        %v1727 = vld [vmem:[%s1324 + $0xc2] sm:$0xff]
        %v1728 = vld [vmem:[%s1324 + $0xca] sm:$0xff]
        %v1729 = vld [vmem:[%s1324 + $0xda] sm:$0xff]
        %v1730 = vld [vmem:[%s1324 + $0xe2] sm:$0xff]
        %v1731 = vld [vmem:[%s1324 + $0xf2] sm:$0xff]
        %v1732 = vld [vmem:[%s1324 + $0xfa] sm:$0xff]
        %v1733 = vld [vmem:[%s1324 + $0x10a] sm:$0xff]
        %v1734 = vld [vmem:[%s1324 + $0x112] sm:$0xff]
        %v1735 = vld [vmem:[%s1324 + $0x122] sm:$0xff]
        %v1736 = vld [vmem:[%s1324 + $0x12a] sm:$0xff]
        %v1737 = vld [vmem:[%s1324 + $0x13a] sm:$0xff]
        %v1738 = vld [vmem:[%s1324 + $0x142] sm:$0xff]
        %v1739 = vld [vmem:[%s1324 + $0x152] sm:$0xff]
        %v1740 = vld [vmem:[%s1324 + $0x15a] sm:$0xff]
        %v1741 = vld [vmem:[%s1324 + $0x16a] sm:$0xff]
        %v1742 = vld [vmem:[%s1324 + $0x172] sm:$0xff]
        %1775 = vrot.lane.b32.xlu0 %v1711, 32
        %v1776 = vpop.permute.xlu0 %1775
        %1777 = vrot.lane.b32.xlu0 %v1712, 32
        %v1778 = vpop.permute.xlu0 %1777
        %1779 = vrot.lane.b32.xlu0 %v1713, 32
        %v1780 = vpop.permute.xlu0 %1779
        %1781 = vrot.lane.b32.xlu0 %v1714, 32
        %v1782 = vpop.permute.xlu0 %1781
        %1783 = vrot.lane.b32.xlu0 %v1715, 32
        %v1784 = vpop.permute.xlu0 %1783
        %1785 = vrot.lane.b32.xlu0 %v1716, 32
        %v1786 = vpop.permute.xlu0 %1785
        %1787 = vrot.lane.b32.xlu0 %v1717, 32
        %v1788 = vpop.permute.xlu0 %1787
        %1789 = vrot.lane.b32.xlu0 %v1718, 32
        %v1790 = vpop.permute.xlu0 %1789
        %1791 = vrot.lane.b32.xlu0 %v1719, 32
        %v1792 = vpop.permute.xlu0 %1791
        %1793 = vrot.lane.b32.xlu0 %v1720, 32
        %v1794 = vpop.permute.xlu0 %1793
        %1795 = vrot.lane.b32.xlu0 %v1721, 32
        %v1796 = vpop.permute.xlu0 %1795
        %1797 = vrot.lane.b32.xlu0 %v1722, 32
        %v1798 = vpop.permute.xlu0 %1797
        %1799 = vrot.lane.b32.xlu0 %v1723, 32
        %v1800 = vpop.permute.xlu0 %1799
        %1801 = vrot.lane.b32.xlu0 %v1724, 32
        %v1802 = vpop.permute.xlu0 %1801
        %1803 = vrot.lane.b32.xlu0 %v1725, 32
        %v1804 = vpop.permute.xlu0 %1803
        %1805 = vrot.lane.b32.xlu0 %v1726, 32
        %v1806 = vpop.permute.xlu0 %1805
        %1807 = vrot.lane.b32.xlu0 %v1727, 32
        %v1808 = vpop.permute.xlu0 %1807
        %1809 = vrot.lane.b32.xlu0 %v1728, 32
        %v1810 = vpop.permute.xlu0 %1809
        %1811 = vrot.lane.b32.xlu0 %v1729, 32
        %v1812 = vpop.permute.xlu0 %1811
        %1813 = vrot.lane.b32.xlu0 %v1730, 32
        %v1814 = vpop.permute.xlu0 %1813
        %1815 = vrot.lane.b32.xlu0 %v1731, 32
        %v1816 = vpop.permute.xlu0 %1815
        %1817 = vrot.lane.b32.xlu0 %v1732, 32
        %v1818 = vpop.permute.xlu0 %1817
        %1819 = vrot.lane.b32.xlu0 %v1733, 32
        %v1820 = vpop.permute.xlu0 %1819
        %1821 = vrot.lane.b32.xlu0 %v1734, 32
        %v1822 = vpop.permute.xlu0 %1821
        %1823 = vrot.lane.b32.xlu0 %v1735, 32
        %v1824 = vpop.permute.xlu0 %1823
        %1825 = vrot.lane.b32.xlu0 %v1736, 32
        %v1826 = vpop.permute.xlu0 %1825
        %1827 = vrot.lane.b32.xlu0 %v1737, 32
        %v1828 = vpop.permute.xlu0 %1827
        %1829 = vrot.lane.b32.xlu0 %v1738, 32
        %v1830 = vpop.permute.xlu0 %1829
        %1831 = vrot.lane.b32.xlu0 %v1739, 32
        %v1832 = vpop.permute.xlu0 %1831
        %1833 = vrot.lane.b32.xlu0 %v1740, 32
        %v1834 = vpop.permute.xlu0 %1833
        %1835 = vrot.lane.b32.xlu0 %v1741, 32
        %v1836 = vpop.permute.xlu0 %1835
        %1837 = vrot.lane.b32.xlu0 %v1742, 32
        %v1838 = vpop.permute.xlu0 %1837
        %vm1871 = vcmask 294144
        %1872 = vst.msk [vmem:[#allocation3] sm:$0xff] %vm1871, %v1776
        %1873 = vst.msk [vmem:[#allocation3 + $0x8] sm:$0xff] %vm1871, %v1778
        %1874 = vst.msk [vmem:[#allocation3 + $0x10] sm:$0xff] %vm1871, %v1780
        %1875 = vst.msk [vmem:[#allocation3 + $0x18] sm:$0xff] %vm1871, %v1782
        %1876 = vst.msk [vmem:[#allocation3 + $0x20] sm:$0xff] %vm1871, %v1784
        %1877 = vst.msk [vmem:[#allocation3 + $0x28] sm:$0xff] %vm1871, %v1786
        %1878 = vst.msk [vmem:[#allocation3 + $0x30] sm:$0xff] %vm1871, %v1788
        %1879 = vst.msk [vmem:[#allocation3 + $0x38] sm:$0xff] %vm1871, %v1790
        %1880 = vst.msk [vmem:[#allocation3 + $0x40] sm:$0xff] %vm1871, %v1792
        %1881 = vst.msk [vmem:[#allocation3 + $0x48] sm:$0xff] %vm1871, %v1794
        %1882 = vst.msk [vmem:[#allocation3 + $0x50] sm:$0xff] %vm1871, %v1796
        %1883 = vst.msk [vmem:[#allocation3 + $0x58] sm:$0xff] %vm1871, %v1798
        %1884 = vst.msk [vmem:[#allocation3 + $0x60] sm:$0xff] %vm1871, %v1800
        %1885 = vst.msk [vmem:[#allocation3 + $0x68] sm:$0xff] %vm1871, %v1802
        %1886 = vst.msk [vmem:[#allocation3 + $0x70] sm:$0xff] %vm1871, %v1804
        %1887 = vst.msk [vmem:[#allocation3 + $0x78] sm:$0xff] %vm1871, %v1806
        %1888 = vst.msk [vmem:[#allocation3 + $0x80] sm:$0xff] %vm1871, %v1808
        %1889 = vst.msk [vmem:[#allocation3 + $0x88] sm:$0xff] %vm1871, %v1810
        %1890 = vst.msk [vmem:[#allocation3 + $0x90] sm:$0xff] %vm1871, %v1812
        %1891 = vst.msk [vmem:[#allocation3 + $0x98] sm:$0xff] %vm1871, %v1814
        %1892 = vst.msk [vmem:[#allocation3 + $0xa0] sm:$0xff] %vm1871, %v1816
        %1893 = vst.msk [vmem:[#allocation3 + $0xa8] sm:$0xff] %vm1871, %v1818
        %1894 = vst.msk [vmem:[#allocation3 + $0xb0] sm:$0xff] %vm1871, %v1820
        %1895 = vst.msk [vmem:[#allocation3 + $0xb8] sm:$0xff] %vm1871, %v1822
        %1896 = vst.msk [vmem:[#allocation3 + $0xc0] sm:$0xff] %vm1871, %v1824
        %1897 = vst.msk [vmem:[#allocation3 + $0xc8] sm:$0xff] %vm1871, %v1826
        %1898 = vst.msk [vmem:[#allocation3 + $0xd0] sm:$0xff] %vm1871, %v1828
        %1899 = vst.msk [vmem:[#allocation3 + $0xd8] sm:$0xff] %vm1871, %v1830
        %1900 = vst.msk [vmem:[#allocation3 + $0xe0] sm:$0xff] %vm1871, %v1832
        %1901 = vst.msk [vmem:[#allocation3 + $0xe8] sm:$0xff] %vm1871, %v1834
        %1902 = vst.msk [vmem:[#allocation3 + $0xf0] sm:$0xff] %vm1871, %v1836
        %1903 = vst.msk [vmem:[#allocation3 + $0xf8] sm:$0xff] %vm1871, %v1838
        %v1904 = vld [vmem:[#allocation3] sm:$0xff]
        %v1905 = vld [vmem:[#allocation3 + $0x8] sm:$0xff]
        %v1906 = vld [vmem:[#allocation3 + $0x10] sm:$0xff]
        %v1907 = vld [vmem:[#allocation3 + $0x18] sm:$0xff]
        %v1908 = vld [vmem:[#allocation3 + $0x20] sm:$0xff]
        %v1909 = vld [vmem:[#allocation3 + $0x28] sm:$0xff]
        %v1910 = vld [vmem:[#allocation3 + $0x30] sm:$0xff]
        %v1911 = vld [vmem:[#allocation3 + $0x38] sm:$0xff]
        %v1912 = vld [vmem:[#allocation3 + $0x40] sm:$0xff]
        %v1913 = vld [vmem:[#allocation3 + $0x48] sm:$0xff]
        %v1914 = vld [vmem:[#allocation3 + $0x50] sm:$0xff]
        %v1915 = vld [vmem:[#allocation3 + $0x58] sm:$0xff]
        %v1916 = vld [vmem:[#allocation3 + $0x60] sm:$0xff]
        %v1917 = vld [vmem:[#allocation3 + $0x68] sm:$0xff]
        %v1918 = vld [vmem:[#allocation3 + $0x70] sm:$0xff]
        %v1919 = vld [vmem:[#allocation3 + $0x78] sm:$0xff]
        %v1920 = vld [vmem:[#allocation3 + $0x80] sm:$0xff]
        %v1921 = vld [vmem:[#allocation3 + $0x88] sm:$0xff]
        %v1922 = vld [vmem:[#allocation3 + $0x90] sm:$0xff]
        %v1923 = vld [vmem:[#allocation3 + $0x98] sm:$0xff]
        %v1924 = vld [vmem:[#allocation3 + $0xa0] sm:$0xff]
        %v1925 = vld [vmem:[#allocation3 + $0xa8] sm:$0xff]
        %v1926 = vld [vmem:[#allocation3 + $0xb0] sm:$0xff]
        %v1927 = vld [vmem:[#allocation3 + $0xb8] sm:$0xff]
        %v1928 = vld [vmem:[#allocation3 + $0xc0] sm:$0xff]
        %v1929 = vld [vmem:[#allocation3 + $0xc8] sm:$0xff]
        %v1930 = vld [vmem:[#allocation3 + $0xd0] sm:$0xff]
        %v1931 = vld [vmem:[#allocation3 + $0xd8] sm:$0xff]
        %v1932 = vld [vmem:[#allocation3 + $0xe0] sm:$0xff]
        %v1933 = vld [vmem:[#allocation3 + $0xe8] sm:$0xff]
        %v1934 = vld [vmem:[#allocation3 + $0xf0] sm:$0xff]
        %v1935 = vld [vmem:[#allocation3 + $0xf8] sm:$0xff]
        %v1936 = vld [vmem:[%s1] sm:$0xff]
        %v1937 = vld [vmem:[%s1 + $0x8] sm:$0xff]
        %v1938 = vld [vmem:[%s1 + $0x10] sm:$0xff]
        %v1939 = vld [vmem:[%s1 + $0x18] sm:$0xff]
        %v1940 = vld [vmem:[%s1 + $0x20] sm:$0xf]
        %vm1941 = vcmask 293888
        %v1943 = vsel %vm1941, %v1904, 0
        %v1946 = vsel %vm1941, %v1905, 0
        %v1949 = vsel %vm1941, %v1906, 0
        %v1952 = vsel %vm1941, %v1907, 0
        %v1955 = vsel %vm1941, %v1908, 0
        %v1958 = vsel %vm1941, %v1909, 0
        %v1961 = vsel %vm1941, %v1910, 0
        %v1964 = vsel %vm1941, %v1911, 0
        %v1967 = vsel %vm1941, %v1912, 0
        %v1970 = vsel %vm1941, %v1913, 0
        %v1973 = vsel %vm1941, %v1914, 0
        %v1976 = vsel %vm1941, %v1915, 0
        %v1979 = vsel %vm1941, %v1916, 0
        %v1982 = vsel %vm1941, %v1917, 0
        %v1985 = vsel %vm1941, %v1918, 0
        %v1988 = vsel %vm1941, %v1919, 0
        %v1991 = vsel %vm1941, %v1920, 0
        %v1994 = vsel %vm1941, %v1921, 0
        %v1997 = vsel %vm1941, %v1922, 0
        %v2000 = vsel %vm1941, %v1923, 0
        %v2003 = vsel %vm1941, %v1924, 0
        %v2006 = vsel %vm1941, %v1925, 0
        %v2009 = vsel %vm1941, %v1926, 0
        %v2012 = vsel %vm1941, %v1927, 0
        %v2015 = vsel %vm1941, %v1928, 0
        %v2018 = vsel %vm1941, %v1929, 0
        %v2021 = vsel %vm1941, %v1930, 0
        %v2024 = vsel %vm1941, %v1931, 0
        %v2027 = vsel %vm1941, %v1932, 0
        %v2030 = vsel %vm1941, %v1933, 0
        %v2033 = vsel %vm1941, %v1934, 0
        %v2036 = vsel %vm1941, %v1935, 0
        %vm2038 = vcmask 1043456
        %v2040 = vsel %vm2038, %v1940, 0
        %2042 = vmatprep.subr.mxu0 0.0
        %2043 = vmatpush1.msra.mxu0 %v1936
        %2044 = vmatprep.subr.mxu0 0.0
        %2045 = vmatpush1.msra.mxu0 %v1937
        %2046 = vmatprep.subr.mxu0 0.0
        %2047 = vmatpush1.msra.mxu0 %v1938
        %2048 = vmatprep.subr.mxu0 0.0
        %2049 = vmatpush1.msra.mxu0 %v1939
        %2050 = vmatprep.subr.mxu0 0.0
        %2051 = vmatpush1.msra.mxu0 %v2040
        %2052 = vmatprep.subr.mxu0 0.0
        %2053 = vmatpush1.msra.mxu0 0.0
        %2054 = vmatprep.subr.mxu0 0.0
        %2055 = vmatpush1.msra.mxu0 0.0
        %2056 = vmatprep.subr.mxu0 0.0
        %2057 = vmatpush1.msra.mxu0 0.0
        %2058 = vmatprep.subr.mxu0 0.0
        %2059 = vmatpush1.msra.mxu0 0.0
        %2060 = vmatprep.subr.mxu0 0.0
        %2061 = vmatpush1.msra.mxu0 0.0
        %2062 = vmatprep.subr.mxu0 0.0
        %2063 = vmatpush1.msra.mxu0 0.0
        %2064 = vmatprep.subr.mxu0 0.0
        %2065 = vmatpush1.msra.mxu0 0.0
        %2066 = vmatprep.subr.mxu0 0.0
        %2067 = vmatpush1.msra.mxu0 0.0
        %2068 = vmatprep.subr.mxu0 0.0
        %2069 = vmatpush1.msra.mxu0 0.0
        %2070 = vmatprep.subr.mxu0 0.0
        %2071 = vmatpush1.msra.mxu0 0.0
        %2072 = vmatprep.subr.mxu0 0.0
        %2073 = vmatpush1.msra.mxu0 0.0
        %2074 = vmatprep.subr.mxu0 0.0
        %2075 = vmatpush1.msra.mxu0 0.0
        %2076 = vmatprep.subr.mxu0 0.0
        %2077 = vmatpush1.msra.mxu0 0.0
        %2078 = vmatprep.subr.mxu0 0.0
        %2079 = vmatpush1.msra.mxu0 0.0
        %2080 = vmatprep.subr.mxu0 0.0
        %2081 = vmatpush1.msra.mxu0 0.0
        %2082 = vmatprep.subr.mxu0 0.0
        %2083 = vmatpush1.msra.mxu0 0.0
        %2084 = vmatprep.subr.mxu0 0.0
        %2085 = vmatpush1.msra.mxu0 0.0
        %2086 = vmatprep.subr.mxu0 0.0
        %2087 = vmatpush1.msra.mxu0 0.0
        %2088 = vmatprep.subr.mxu0 0.0
        %2089 = vmatpush1.msra.mxu0 0.0
        %2090 = vmatprep.subr.mxu0 0.0
        %2091 = vmatpush1.msra.mxu0 0.0
        %2092 = vmatprep.subr.mxu0 0.0
        %2093 = vmatpush1.msra.mxu0 0.0
        %2094 = vmatprep.subr.mxu0 0.0
        %2095 = vmatpush1.msra.mxu0 0.0
        %2096 = vmatprep.subr.mxu0 0.0
        %2097 = vmatpush1.msra.mxu0 0.0
        %2098 = vmatprep.subr.mxu0 0.0
        %2099 = vmatpush1.msra.mxu0 0.0
        %2100 = vmatprep.subr.mxu0 0.0
        %2101 = vmatpush1.msra.mxu0 0.0
        %2102 = vmatprep.subr.mxu0 0.0
        %2103 = vmatpush1.msra.mxu0 0.0
        %2104 = vmatprep.subr.mxu0 0.0
        %2105 = vmatpush1.msra.mxu0 0.0
        %2106 = vmatprep.mubr.f32.mxu0 0.0
        %2107 = vmatmul.mubr.f32.gmra.mrb[0].mxu0 %v1943
        %v2108 = vpop.f32.mrb[0].mxu0
        %v2109 = vadd.f32 0.0, %v2108
        %v2110 = vpop.f32.mrb[0].mxu0
        %2111 = vmatprep.mubr.f32.mxu0 0.0
        %2112 = vmatmul.mubr.f32.gmra.mrb[0].mxu0 %v1946
        %v2113 = vpop.f32.mrb[0].mxu0
        %v2114 = vadd.f32 0.0, %v2113
        %v2115 = vpop.f32.mrb[0].mxu0
        %2116 = vmatprep.mubr.f32.mxu0 0.0
        %2117 = vmatmul.mubr.f32.gmra.mrb[0].mxu0 %v1949
        %v2118 = vpop.f32.mrb[0].mxu0
        %v2119 = vadd.f32 0.0, %v2118
        %v2120 = vpop.f32.mrb[0].mxu0
        %2121 = vmatprep.mubr.f32.mxu0 0.0
        %2122 = vmatmul.mubr.f32.gmra.mrb[0].mxu0 %v1952
        %v2123 = vpop.f32.mrb[0].mxu0
        %v2124 = vadd.f32 0.0, %v2123
        %v2125 = vpop.f32.mrb[0].mxu0
        %2126 = vmatprep.mubr.f32.mxu0 0.0
        %2127 = vmatmul.mubr.f32.gmra.mrb[0].mxu0 %v1955
        %v2128 = vpop.f32.mrb[0].mxu0
        %v2129 = vadd.f32 0.0, %v2128
        %v2130 = vpop.f32.mrb[0].mxu0
        %2131 = vmatprep.mubr.f32.mxu0 0.0
        %2132 = vmatmul.mubr.f32.gmra.mrb[0].mxu0 %v1958
        %v2133 = vpop.f32.mrb[0].mxu0
        %v2134 = vadd.f32 0.0, %v2133
        %v2135 = vpop.f32.mrb[0].mxu0
        %2136 = vmatprep.mubr.f32.mxu0 0.0
        %2137 = vmatmul.mubr.f32.gmra.mrb[0].mxu0 %v1961
        %v2138 = vpop.f32.mrb[0].mxu0
        %v2139 = vadd.f32 0.0, %v2138
        %v2140 = vpop.f32.mrb[0].mxu0
        %2141 = vmatprep.mubr.f32.mxu0 0.0
        %2142 = vmatmul.mubr.f32.gmra.mrb[0].mxu0 %v1964
        %v2143 = vpop.f32.mrb[0].mxu0
        %v2144 = vadd.f32 0.0, %v2143
        %v2145 = vpop.f32.mrb[0].mxu0
        %2146 = vmatprep.mubr.f32.mxu0 0.0
        %2147 = vmatmul.mubr.f32.gmra.mrb[0].mxu0 %v1967
        %v2148 = vpop.f32.mrb[0].mxu0
        %v2149 = vadd.f32 0.0, %v2148
        %v2150 = vpop.f32.mrb[0].mxu0
        %2151 = vmatprep.mubr.f32.mxu0 0.0
        %2152 = vmatmul.mubr.f32.gmra.mrb[0].mxu0 %v1970
        %v2153 = vpop.f32.mrb[0].mxu0
        %v2154 = vadd.f32 0.0, %v2153
        %v2155 = vpop.f32.mrb[0].mxu0
        %2156 = vmatprep.mubr.f32.mxu0 0.0
        %2157 = vmatmul.mubr.f32.gmra.mrb[0].mxu0 %v1973
        %v2158 = vpop.f32.mrb[0].mxu0
        %v2159 = vadd.f32 0.0, %v2158
        %v2160 = vpop.f32.mrb[0].mxu0
        %2161 = vmatprep.mubr.f32.mxu0 0.0
        %2162 = vmatmul.mubr.f32.gmra.mrb[0].mxu0 %v1976
        %v2163 = vpop.f32.mrb[0].mxu0
        %v2164 = vadd.f32 0.0, %v2163
        %v2165 = vpop.f32.mrb[0].mxu0
        %2166 = vmatprep.mubr.f32.mxu0 0.0
        %2167 = vmatmul.mubr.f32.gmra.mrb[0].mxu0 %v1979
        %v2168 = vpop.f32.mrb[0].mxu0
        %v2169 = vadd.f32 0.0, %v2168
        %v2170 = vpop.f32.mrb[0].mxu0
        %2171 = vmatprep.mubr.f32.mxu0 0.0
        %2172 = vmatmul.mubr.f32.gmra.mrb[0].mxu0 %v1982
        %v2173 = vpop.f32.mrb[0].mxu0
        %v2174 = vadd.f32 0.0, %v2173
        %v2175 = vpop.f32.mrb[0].mxu0
        %2176 = vmatprep.mubr.f32.mxu0 0.0
        %2177 = vmatmul.mubr.f32.gmra.mrb[0].mxu0 %v1985
        %v2178 = vpop.f32.mrb[0].mxu0
        %v2179 = vadd.f32 0.0, %v2178
        %v2180 = vpop.f32.mrb[0].mxu0
        %2181 = vmatprep.mubr.f32.mxu0 0.0
        %2182 = vmatmul.mubr.f32.gmra.mrb[0].mxu0 %v1988
        %v2183 = vpop.f32.mrb[0].mxu0
        %v2184 = vadd.f32 0.0, %v2183
        %v2185 = vpop.f32.mrb[0].mxu0
        %2186 = vmatprep.mubr.f32.mxu0 0.0
        %2187 = vmatmul.mubr.f32.gmra.mrb[0].mxu0 %v1991
        %v2188 = vpop.f32.mrb[0].mxu0
        %v2189 = vadd.f32 0.0, %v2188
        %v2190 = vpop.f32.mrb[0].mxu0
        %2191 = vmatprep.mubr.f32.mxu0 0.0
        %2192 = vmatmul.mubr.f32.gmra.mrb[0].mxu0 %v1994
        %v2193 = vpop.f32.mrb[0].mxu0
        %v2194 = vadd.f32 0.0, %v2193
        %v2195 = vpop.f32.mrb[0].mxu0
        %2196 = vmatprep.mubr.f32.mxu0 0.0
        %2197 = vmatmul.mubr.f32.gmra.mrb[0].mxu0 %v1997
        %v2198 = vpop.f32.mrb[0].mxu0
        %v2199 = vadd.f32 0.0, %v2198
        %v2200 = vpop.f32.mrb[0].mxu0
        %2201 = vmatprep.mubr.f32.mxu0 0.0
        %2202 = vmatmul.mubr.f32.gmra.mrb[0].mxu0 %v2000
        %v2203 = vpop.f32.mrb[0].mxu0
        %v2204 = vadd.f32 0.0, %v2203
        %v2205 = vpop.f32.mrb[0].mxu0
        %2206 = vmatprep.mubr.f32.mxu0 0.0
        %2207 = vmatmul.mubr.f32.gmra.mrb[0].mxu0 %v2003
        %v2208 = vpop.f32.mrb[0].mxu0
        %v2209 = vadd.f32 0.0, %v2208
        %v2210 = vpop.f32.mrb[0].mxu0
        %2211 = vmatprep.mubr.f32.mxu0 0.0
        %2212 = vmatmul.mubr.f32.gmra.mrb[0].mxu0 %v2006
        %v2213 = vpop.f32.mrb[0].mxu0
        %v2214 = vadd.f32 0.0, %v2213
        %v2215 = vpop.f32.mrb[0].mxu0
        %2216 = vmatprep.mubr.f32.mxu0 0.0
        %2217 = vmatmul.mubr.f32.gmra.mrb[0].mxu0 %v2009
        %v2218 = vpop.f32.mrb[0].mxu0
        %v2219 = vadd.f32 0.0, %v2218
        %v2220 = vpop.f32.mrb[0].mxu0
        %2221 = vmatprep.mubr.f32.mxu0 0.0
        %2222 = vmatmul.mubr.f32.gmra.mrb[0].mxu0 %v2012
        %v2223 = vpop.f32.mrb[0].mxu0
        %v2224 = vadd.f32 0.0, %v2223
        %v2225 = vpop.f32.mrb[0].mxu0
        %2226 = vmatprep.mubr.f32.mxu0 0.0
        %2227 = vmatmul.mubr.f32.gmra.mrb[0].mxu0 %v2015
        %v2228 = vpop.f32.mrb[0].mxu0
        %v2229 = vadd.f32 0.0, %v2228
        %v2230 = vpop.f32.mrb[0].mxu0
        %2231 = vmatprep.mubr.f32.mxu0 0.0
        %2232 = vmatmul.mubr.f32.gmra.mrb[0].mxu0 %v2018
        %v2233 = vpop.f32.mrb[0].mxu0
        %v2234 = vadd.f32 0.0, %v2233
        %v2235 = vpop.f32.mrb[0].mxu0
        %2236 = vmatprep.mubr.f32.mxu0 0.0
        %2237 = vmatmul.mubr.f32.gmra.mrb[0].mxu0 %v2021
        %v2238 = vpop.f32.mrb[0].mxu0
        %v2239 = vadd.f32 0.0, %v2238
        %v2240 = vpop.f32.mrb[0].mxu0
        %2241 = vmatprep.mubr.f32.mxu0 0.0
        %2242 = vmatmul.mubr.f32.gmra.mrb[0].mxu0 %v2024
        %v2243 = vpop.f32.mrb[0].mxu0
        %v2244 = vadd.f32 0.0, %v2243
        %v2245 = vpop.f32.mrb[0].mxu0
        %2246 = vmatprep.mubr.f32.mxu0 0.0
        %2247 = vmatmul.mubr.f32.gmra.mrb[0].mxu0 %v2027
        %v2248 = vpop.f32.mrb[0].mxu0
        %v2249 = vadd.f32 0.0, %v2248
        %v2250 = vpop.f32.mrb[0].mxu0
        %2251 = vmatprep.mubr.f32.mxu0 0.0
        %2252 = vmatmul.mubr.f32.gmra.mrb[0].mxu0 %v2030
        %v2253 = vpop.f32.mrb[0].mxu0
        %v2254 = vadd.f32 0.0, %v2253
        %v2255 = vpop.f32.mrb[0].mxu0
        %2256 = vmatprep.mubr.f32.mxu0 0.0
        %2257 = vmatmul.mubr.f32.gmra.mrb[0].mxu0 %v2033
        %v2258 = vpop.f32.mrb[0].mxu0
        %v2259 = vadd.f32 0.0, %v2258
        %v2260 = vpop.f32.mrb[0].mxu0
        %2261 = vmatprep.mubr.f32.mxu0 0.0
        %2262 = vmatmul.mubr.f32.gmra.mrb[0].mxu0 %v2036
        %v2263 = vpop.f32.mrb[0].mxu0
        %v2264 = vadd.f32 0.0, %v2263
        %v2265 = vpop.f32.mrb[0].mxu0
        %2266 = vdwg.mxu0
        %v2267 = vld [vmem:[#allocation7] sm:$0x1]
        %v2268 = vadd.f32 %v2109, %v2114
        %v2269 = vadd.f32 %v2268, %v2119
        %v2270 = vadd.f32 %v2269, %v2124
        %v2271 = vadd.f32 %v2270, %v2129
        %v2272 = vadd.f32 %v2271, %v2134
        %v2273 = vadd.f32 %v2272, %v2139
        %v2274 = vadd.f32 %v2273, %v2144
        %v2275 = vadd.f32 %v2274, %v2149
        %v2276 = vadd.f32 %v2275, %v2154
        %v2277 = vadd.f32 %v2276, %v2159
        %v2278 = vadd.f32 %v2277, %v2164
        %v2279 = vadd.f32 %v2278, %v2169
        %v2280 = vadd.f32 %v2279, %v2174
        %v2281 = vadd.f32 %v2280, %v2179
        %v2282 = vadd.f32 %v2281, %v2184
        %v2283 = vadd.f32 %v2282, %v2189
        %v2284 = vadd.f32 %v2283, %v2194
        %v2285 = vadd.f32 %v2284, %v2199
        %v2286 = vadd.f32 %v2285, %v2204
        %v2287 = vadd.f32 %v2286, %v2209
        %v2288 = vadd.f32 %v2287, %v2214
        %v2289 = vadd.f32 %v2288, %v2219
        %v2290 = vadd.f32 %v2289, %v2224
        %v2291 = vadd.f32 %v2290, %v2229
        %v2292 = vadd.f32 %v2291, %v2234
        %v2293 = vadd.f32 %v2292, %v2239
        %v2294 = vadd.f32 %v2293, %v2244
        %v2295 = vadd.f32 %v2294, %v2249
        %v2296 = vadd.f32 %v2295, %v2254
        %v2297 = vadd.f32 %v2296, %v2259
        %v2298 = vadd.f32 %v2297, %v2264
        %v2299 = vrot.slane %v2298, 4
        %v2300 = vadd.f32 %v2298, %v2299
        %v2301 = vrot.slane %v2300, 2
        %v2302 = vadd.f32 %v2300, %v2301
        %v2303 = vrot.slane %v2302, 1
        %v2304 = vadd.f32 %v2302, %v2303
        %v2305 = vadd.f32 %v2267, %v2304
        %2306 = vst [vmem:[#allocation7] sm:$0x1] %v2305
        %v2307 = vld [vmem:[#allocation7 + $0x1] sm:$0x1]
        %v2308 = vmul.f32 %v2109, %v2109
        %v2309 = vmul.f32 %v2114, %v2114
        %v2310 = vmul.f32 %v2119, %v2119
        %v2311 = vmul.f32 %v2124, %v2124
        %v2312 = vmul.f32 %v2129, %v2129
        %v2313 = vmul.f32 %v2134, %v2134
        %v2314 = vmul.f32 %v2139, %v2139
        %v2315 = vmul.f32 %v2144, %v2144
        %v2316 = vmul.f32 %v2149, %v2149
        %v2317 = vmul.f32 %v2154, %v2154
        %v2318 = vmul.f32 %v2159, %v2159
        %v2319 = vmul.f32 %v2164, %v2164
        %v2320 = vmul.f32 %v2169, %v2169
        %v2321 = vmul.f32 %v2174, %v2174
        %v2322 = vmul.f32 %v2179, %v2179
        %v2323 = vmul.f32 %v2184, %v2184
        %v2324 = vmul.f32 %v2189, %v2189
        %v2325 = vmul.f32 %v2194, %v2194
        %v2326 = vmul.f32 %v2199, %v2199
        %v2327 = vmul.f32 %v2204, %v2204
        %v2328 = vmul.f32 %v2209, %v2209
        %v2329 = vmul.f32 %v2214, %v2214
        %v2330 = vmul.f32 %v2219, %v2219
        %v2331 = vmul.f32 %v2224, %v2224
        %v2332 = vmul.f32 %v2229, %v2229
        %v2333 = vmul.f32 %v2234, %v2234
        %v2334 = vmul.f32 %v2239, %v2239
        %v2335 = vmul.f32 %v2244, %v2244
        %v2336 = vmul.f32 %v2249, %v2249
        %v2337 = vmul.f32 %v2254, %v2254
        %v2338 = vmul.f32 %v2259, %v2259
        %v2339 = vmul.f32 %v2264, %v2264
        %v2340 = vadd.f32 %v2308, %v2309
        %v2341 = vadd.f32 %v2340, %v2310
        %v2342 = vadd.f32 %v2341, %v2311
        %v2343 = vadd.f32 %v2342, %v2312
        %v2344 = vadd.f32 %v2343, %v2313
        %v2345 = vadd.f32 %v2344, %v2314
        %v2346 = vadd.f32 %v2345, %v2315
        %v2347 = vadd.f32 %v2346, %v2316
        %v2348 = vadd.f32 %v2347, %v2317
        %v2349 = vadd.f32 %v2348, %v2318
        %v2350 = vadd.f32 %v2349, %v2319
        %v2351 = vadd.f32 %v2350, %v2320
        %v2352 = vadd.f32 %v2351, %v2321
        %v2353 = vadd.f32 %v2352, %v2322
        %v2354 = vadd.f32 %v2353, %v2323
        %v2355 = vadd.f32 %v2354, %v2324
        %v2356 = vadd.f32 %v2355, %v2325
        %v2357 = vadd.f32 %v2356, %v2326
        %v2358 = vadd.f32 %v2357, %v2327
        %v2359 = vadd.f32 %v2358, %v2328
        %v2360 = vadd.f32 %v2359, %v2329
        %v2361 = vadd.f32 %v2360, %v2330
        %v2362 = vadd.f32 %v2361, %v2331
        %v2363 = vadd.f32 %v2362, %v2332
        %v2364 = vadd.f32 %v2363, %v2333
        %v2365 = vadd.f32 %v2364, %v2334
        %v2366 = vadd.f32 %v2365, %v2335
        %v2367 = vadd.f32 %v2366, %v2336
        %v2368 = vadd.f32 %v2367, %v2337
        %v2369 = vadd.f32 %v2368, %v2338
        %v2370 = vadd.f32 %v2369, %v2339
        %v2371 = vrot.slane %v2370, 4
        %v2372 = vadd.f32 %v2370, %v2371
        %v2373 = vrot.slane %v2372, 2
        %v2374 = vadd.f32 %v2372, %v2373
        %v2375 = vrot.slane %v2374, 1
        %v2376 = vadd.f32 %v2374, %v2375
        %v2377 = vadd.f32 %v2307, %v2376
        %2378 = vst [vmem:[#allocation7 + $0x1] sm:$0x1] %v2377
        %2379 = vst [vmem:[#allocation4] sm:$0xff] %v2109
        %2380 = vst [vmem:[#allocation4 + $0x8] sm:$0xff] %v2114
        %2381 = vst [vmem:[#allocation4 + $0x10] sm:$0xff] %v2119
        %2382 = vst [vmem:[#allocation4 + $0x18] sm:$0xff] %v2124
        %2383 = vst [vmem:[#allocation4 + $0x20] sm:$0xff] %v2129
        %2384 = vst [vmem:[#allocation4 + $0x28] sm:$0xff] %v2134
        %2385 = vst [vmem:[#allocation4 + $0x30] sm:$0xff] %v2139
        %2386 = vst [vmem:[#allocation4 + $0x38] sm:$0xff] %v2144
        %2387 = vst [vmem:[#allocation4 + $0x40] sm:$0xff] %v2149
        %2388 = vst [vmem:[#allocation4 + $0x48] sm:$0xff] %v2154
        %2389 = vst [vmem:[#allocation4 + $0x50] sm:$0xff] %v2159
        %2390 = vst [vmem:[#allocation4 + $0x58] sm:$0xff] %v2164
        %2391 = vst [vmem:[#allocation4 + $0x60] sm:$0xff] %v2169
        %2392 = vst [vmem:[#allocation4 + $0x68] sm:$0xff] %v2174
        %2393 = vst [vmem:[#allocation4 + $0x70] sm:$0xff] %v2179
        %2394 = vst [vmem:[#allocation4 + $0x78] sm:$0xff] %v2184
        %2395 = vst [vmem:[#allocation4 + $0x80] sm:$0xff] %v2189
        %2396 = vst [vmem:[#allocation4 + $0x88] sm:$0xff] %v2194
        %2397 = vst [vmem:[#allocation4 + $0x90] sm:$0xff] %v2199
        %2398 = vst [vmem:[#allocation4 + $0x98] sm:$0xff] %v2204
        %2399 = vst [vmem:[#allocation4 + $0xa0] sm:$0xff] %v2209
        %2400 = vst [vmem:[#allocation4 + $0xa8] sm:$0xff] %v2214
        %2401 = vst [vmem:[#allocation4 + $0xb0] sm:$0xff] %v2219
        %2402 = vst [vmem:[#allocation4 + $0xb8] sm:$0xff] %v2224
        %2403 = vst [vmem:[#allocation4 + $0xc0] sm:$0xff] %v2229
        %2404 = vst [vmem:[#allocation4 + $0xc8] sm:$0xff] %v2234
        %2405 = vst [vmem:[#allocation4 + $0xd0] sm:$0xff] %v2239
        %2406 = vst [vmem:[#allocation4 + $0xd8] sm:$0xff] %v2244
        %2407 = vst [vmem:[#allocation4 + $0xe0] sm:$0xff] %v2249
        %2408 = vst [vmem:[#allocation4 + $0xe8] sm:$0xff] %v2254
        %2409 = vst [vmem:[#allocation4 + $0xf0] sm:$0xff] %v2259
        %2410 = vst [vmem:[#allocation4 + $0xf8] sm:$0xff] %v2264
        %v2411 = vld [vmem:[#allocation4] ss:$2 sm:$0xff]
        %s2412 = scalar_lea.vmem [#allocation4], 16
        %v2413 = vld [vmem:[%s2412] ss:$2 sm:$0xff]
        %s2414 = scalar_lea.vmem [#allocation4], 32
        %v2415 = vld [vmem:[%s2414] ss:$2 sm:$0xff]
        %s2416 = scalar_lea.vmem [#allocation4], 48
        %v2417 = vld [vmem:[%s2416] ss:$2 sm:$0xff]
        %s2418 = scalar_lea.vmem [#allocation4], 64
        %v2419 = vld [vmem:[%s2418] ss:$2 sm:$0xff]
        %s2420 = scalar_lea.vmem [#allocation4], 80
        %v2421 = vld [vmem:[%s2420] ss:$2 sm:$0xff]
        %s2422 = scalar_lea.vmem [#allocation4], 96
        %v2423 = vld [vmem:[%s2422] ss:$2 sm:$0xff]
        %s2424 = scalar_lea.vmem [#allocation4], 112
        %v2425 = vld [vmem:[%s2424] ss:$2 sm:$0xff]
        %s2426 = scalar_lea.vmem [#allocation4], 128
        %v2427 = vld [vmem:[%s2426] ss:$2 sm:$0xff]
        %s2428 = scalar_lea.vmem [#allocation4], 144
        %v2429 = vld [vmem:[%s2428] ss:$2 sm:$0xff]
        %s2430 = scalar_lea.vmem [#allocation4], 160
        %v2431 = vld [vmem:[%s2430] ss:$2 sm:$0xff]
        %s2432 = scalar_lea.vmem [#allocation4], 176
        %v2433 = vld [vmem:[%s2432] ss:$2 sm:$0xff]
        %s2434 = scalar_lea.vmem [#allocation4], 192
        %v2435 = vld [vmem:[%s2434] ss:$2 sm:$0xff]
        %s2436 = scalar_lea.vmem [#allocation4], 208
        %v2437 = vld [vmem:[%s2436] ss:$2 sm:$0xff]
        %s2438 = scalar_lea.vmem [#allocation4], 224
        %v2439 = vld [vmem:[%s2438] ss:$2 sm:$0xff]
        %s2440 = scalar_lea.vmem [#allocation4], 240
        %v2441 = vld [vmem:[%s2440] ss:$2 sm:$0xff]
        %s2442 = scalar_lea.vmem [#allocation4], 1
        %v2443 = vld [vmem:[%s2442] ss:$2 sm:$0xff]
        %s2444 = scalar_lea.vmem [#allocation4], 17
        %v2445 = vld [vmem:[%s2444] ss:$2 sm:$0xff]
        %s2446 = scalar_lea.vmem [#allocation4], 33
        %v2447 = vld [vmem:[%s2446] ss:$2 sm:$0xff]
        %s2448 = scalar_lea.vmem [#allocation4], 49
        %v2449 = vld [vmem:[%s2448] ss:$2 sm:$0xff]
        %s2450 = scalar_lea.vmem [#allocation4], 65
        %v2451 = vld [vmem:[%s2450] ss:$2 sm:$0xff]
        %s2452 = scalar_lea.vmem [#allocation4], 81
        %v2453 = vld [vmem:[%s2452] ss:$2 sm:$0xff]
        %s2454 = scalar_lea.vmem [#allocation4], 97
        %v2455 = vld [vmem:[%s2454] ss:$2 sm:$0xff]
        %s2456 = scalar_lea.vmem [#allocation4], 113
        %v2457 = vld [vmem:[%s2456] ss:$2 sm:$0xff]
        %s2458 = scalar_lea.vmem [#allocation4], 129
        %v2459 = vld [vmem:[%s2458] ss:$2 sm:$0xff]
        %s2460 = scalar_lea.vmem [#allocation4], 145
        %v2461 = vld [vmem:[%s2460] ss:$2 sm:$0xff]
        %s2462 = scalar_lea.vmem [#allocation4], 161
        %v2463 = vld [vmem:[%s2462] ss:$2 sm:$0xff]
        %s2464 = scalar_lea.vmem [#allocation4], 177
        %v2465 = vld [vmem:[%s2464] ss:$2 sm:$0xff]
        %s2466 = scalar_lea.vmem [#allocation4], 193
        %v2467 = vld [vmem:[%s2466] ss:$2 sm:$0xff]
        %s2468 = scalar_lea.vmem [#allocation4], 209
        %v2469 = vld [vmem:[%s2468] ss:$2 sm:$0xff]
        %s2470 = scalar_lea.vmem [#allocation4], 225
        %v2471 = vld [vmem:[%s2470] ss:$2 sm:$0xff]
        %s2472 = scalar_lea.vmem [#allocation4], 241
        %v2473 = vld [vmem:[%s2472] ss:$2 sm:$0xff]
        %v2474 = vmax.f32 %v2411, %v2443
        %v2475 = vmax.f32 %v2413, %v2445
        %v2476 = vmax.f32 %v2415, %v2447
        %v2477 = vmax.f32 %v2417, %v2449
        %v2478 = vmax.f32 %v2419, %v2451
        %v2479 = vmax.f32 %v2421, %v2453
        %v2480 = vmax.f32 %v2423, %v2455
        %v2481 = vmax.f32 %v2425, %v2457
        %v2482 = vmax.f32 %v2427, %v2459
        %v2483 = vmax.f32 %v2429, %v2461
        %v2484 = vmax.f32 %v2431, %v2463
        %v2485 = vmax.f32 %v2433, %v2465
        %v2486 = vmax.f32 %v2435, %v2467
        %v2487 = vmax.f32 %v2437, %v2469
        %v2488 = vmax.f32 %v2439, %v2471
        %v2489 = vmax.f32 %v2441, %v2473
        %v2490 = vmax.f32 %v2474, %v2475
        %v2491 = vmax.f32 %v2476, %v2477
        %v2492 = vmax.f32 %v2478, %v2479
        %v2493 = vmax.f32 %v2480, %v2481
        %v2494 = vmax.f32 %v2482, %v2483
        %v2495 = vmax.f32 %v2484, %v2485
        %v2496 = vmax.f32 %v2486, %v2487
        %v2497 = vmax.f32 %v2488, %v2489
        %2498 = vst [vmem:[%s160] sm:$0xff] %v2490
        %2499 = vst [vmem:[%s160 + $0x8] sm:$0xff] %v2491
        %2500 = vst [vmem:[%s160 + $0x10] sm:$0xff] %v2492
        %2501 = vst [vmem:[%s160 + $0x18] sm:$0xff] %v2493
        %2502 = vst [vmem:[%s160 + $0x20] sm:$0xff] %v2494
        %2503 = vst [vmem:[%s160 + $0x28] sm:$0xff] %v2495
        %2504 = vst [vmem:[%s160 + $0x30] sm:$0xff] %v2496
        %2505 = vst [vmem:[%s160 + $0x38] sm:$0xff] %v2497
        %s2506 = sand.u32 %s74, 1
        %s2507 = scalar_lea.sflag [#allocation6], %s2506
        %s2508 = sand.u32 %s74, 1
        %s2509 = smul.addr %s2508, 64
        %s2510 = scalar_lea.vmem [#allocation5], %s2509
        // Predicated region
        $region33: #{tpu_custom_call.1} parent=27 // pred_check
          %p2511 = pneg %p84
        $region34: #{tpu_custom_call.1} parent=27 // pred_check_branch
          %2513 = sbr.rel (%p2511) target = $region36
        $region35: #{tpu_custom_call.1} parent=27 // pred_region
          %s2515 = ssub.s32 1024, 1024
          %2516 = vsyncadd %s2507, %s2515
          %s2517 = smul.addr %s19, 8
          %s2518 = smul.addr %s2517, 128
          %s2519 = scalar_lea.hbm %s2, %s2518
          %s2520 = sshll.u32 %s2510, 4
          %s2521 = int_to_ptr.vmem [resolvable:$true] %s2520
          %2526 = dma.vmem_to_hbm [thread:$0]  %s2521, 1024, %s2519, %s2507, 128, 128, 8
        $region36: #{tpu_custom_call.1} parent=27 // pred_fallthru
          _
        // Predicated region
        $region37: #{tpu_custom_call.1} parent=27 // pred_check
          %p2527 = pneg %p105
        $region38: #{tpu_custom_call.1} parent=27 // pred_check_branch
          %2529 = sbr.rel (%p2527) target = $region40
        $region39: #{tpu_custom_call.1} parent=27 // pred_region
          %s2531 = ssub.s32 32, 32
          %2532 = vsyncadd [#allocation8], %s2531
          %s2534 = sshll.u32 [#allocation7], 4
          %s2535 = int_to_ptr.vmem [resolvable:$true] %s2534
          %2537 = dma.vmem_to_hbm [thread:$0]  %s2535, 32, %s3, [#allocation8]
        $region40: #{tpu_custom_call.1} parent=27 // pred_fallthru
          _
        // Predicated region
        $region41: #{tpu_custom_call.1} parent=27 // pred_check
          %p2538 = pneg %p105
        $region42: #{tpu_custom_call.1} parent=27 // pred_check_branch
          %2540 = sbr.rel (%p2538) target = $region44
        $region43: #{tpu_custom_call.1} parent=27 // pred_region
          %2541 = dma.done [#allocation8], 32
        $region44: #{tpu_custom_call.1} parent=27 // pred_fallthru
          _
      $region28: #{tpu_custom_call.1} parent=5 // pred_fallthru
        _
      %p2542 = scmp.le.s32.totalorder 2, %s14
      // Predicated region
      $region45: #{tpu_custom_call.1} parent=5 // pred_check
        %p2543 = pneg %p2542
      $region46: #{tpu_custom_call.1} parent=5 // pred_check_branch
        %2545 = sbr.rel (%p2543) target = $region48
      $region47: #{tpu_custom_call.1} parent=5 // pred_region
        %s2546 = ssub.s32 %s14, 2
        // Predicated region
        $region49: #{tpu_custom_call.1} parent=47 // pred_check
          %p2547 = pneg %p90
        $region50: #{tpu_custom_call.1} parent=47 // pred_check_branch
          %2549 = sbr.rel (%p2547) target = $region52
        $region51: #{tpu_custom_call.1} parent=47 // pred_region
          %s2550 = sand.u32 %s75, 1
          %s2551 = scalar_lea.sflag [#allocation6], %s2550
          %s2552 = sand.u32 %s75, 1
          %s2553 = smul.addr %s2552, 64
          %s2554 = scalar_lea.vmem [#allocation5], %s2553
          %2555 = dma.done %s2551, 1024
        $region52: #{tpu_custom_call.1} parent=47 // pred_fallthru
          _
      $region48: #{tpu_custom_call.1} parent=5 // pred_fallthru
        _
    $region6: #{tpu_custom_call.1} parent=1 // loop_footer
      %s18 = sadd.s32 1, %s14
    $region7: #{tpu_custom_call.1} parent=1 // loop_footer_branch
      %13 = sbr.rel target = $region3
    $region8: #{tpu_custom_call.1} parent=1 // loop_exit
      _
    %2556 = vsyncpa [#allocation6], 1
    %s2557 = scalar_lea.sflag [#allocation6], 1
    %2558 = vsyncpa %s2557, 1
    %2559 = vsyncpa [#allocation8], 1

</llo_original>
